<compile_context>
chip_gen: v5e
topology: v5e:2x2
jax: 0.10.0
libtpu: 0.0.40
codegen_flags: <defaults>
</compile_context>

<pallas_src>
import functools

import numpy as np

import jax
import jax.numpy as jnp
from jax.experimental import pallas as pl
from jax.experimental.pallas import tpu as pltpu

# ---------------------------------------------------------------------------
# Lanczos lgamma (g=7, 9 coefficients) with the partial-fraction sum folded
# into ONE rational P(w)/Q(w).  All lgamma arguments used below are > 0.
# Accuracy degrades for z << 0.5 (same behaviour as the plain Lanczos form);
# the disp term is shifted by +1 so disp -> 0 stays finite.
# ---------------------------------------------------------------------------
_LANCZOS_G = 7.0
_LANCZOS_C0 = 0.99999999999980993
_LANCZOS_COEFS = (
    676.5203681218851,
    -1259.1392167224028,
    771.32342877765313,
    -176.61502916214059,
    12.507343278686905,
    -0.13857109526572012,
    9.9843695780195716e-6,
    1.5056327351493116e-7,
)
_HALF_LOG_2PI = 0.9189385332046727  # 0.5 * log(2*pi)


def _partial_fraction_to_rational(coefs, offsets):
    """sum_i coefs[i]/(w + offsets[i]) -> (num, den) poly coeffs, Horner order."""
    den = np.poly1d([1.0])
    for off in offsets:
        den = den * np.poly1d([1.0, float(off)])
    num = np.poly1d([0.0])
    for c, off in zip(coefs, offsets):
        term = np.poly1d([float(c)])
        for off2 in offsets:
            if off2 != off:
                term = term * np.poly1d([1.0, float(off2)])
        num = num + term
    return (tuple(float(v) for v in num.coeffs),
            tuple(float(v) for v in den.coeffs))


# Single merged rational: 1 reciprocal per lgamma instead of 2 divides.
_PN, _QD = _partial_fraction_to_rational(_LANCZOS_COEFS, (1, 2, 3, 4, 5, 6, 7, 8))

# Q(w) is degree 8; clamp w for the rational so it never overflows f32.  For
# w > 3e4 the series contributes < 1e-3 (absolute) to an lgamma that is >> 1e5,
# so the clamp is numerically irrelevant.
_W_RATIONAL_CLAMP = 30000.0


def _horner(w, coeffs):
    acc = jnp.full_like(w, coeffs[0])
    for c in coeffs[1:]:
        acc = acc * w + c
    return acc


def _recip_nr(v):
    """1/v via EUP approx reciprocal + one Newton-Raphson step (VPU FMA)."""
    r = pl.reciprocal(v, approx=True)
    return r * (2.0 - v * r)


def _lgamma_parts(z):
    """Return (main, acc) with lgamma(z) = main + log(acc), for z > 0.

    EUP cost: 1 log + 1 approx reciprocal; the rest is VPU Horner mul/adds.
    The caller shares a single log(acc) across several lgamma calls.
    """
    w = z - 1.0
    wr = jnp.minimum(w, _W_RATIONAL_CLAMP)
    acc = _LANCZOS_C0 + _horner(wr, _PN) * _recip_nr(_horner(wr, _QD))
    t = z + (_LANCZOS_G - 0.5)
    main = _HALF_LOG_2PI + (z - 0.5) * jnp.log(t) - t
    return main, acc


# ---------------------------------------------------------------------------
# Kernel: per (core, gene-block, row-block) tile ZINB term, accumulated into a
# resident (8, tile_g) partial-sum block with VPU adds only.
# ---------------------------------------------------------------------------
def _zinb_kernel(x_ref, mean_ref, disp_ref, pi_ref, out_ref, *,
                 ridge_lambda, n_valid, g_valid, mask_rows, mask_cols):
    j = pl.program_id(2)

    @pl.when(j == 0)
    def _init():
        out_ref[...] = jnp.zeros_like(out_ref)

    eps = 1e-10
    x = x_ref[...]
    disp = disp_ref[...]
    pi = pi_ref[...]
    mean = mean_ref[...]          # scale_factor already folded in by the wrapper

    tm, tg = x.shape

    # Shared EUP logs -- every term below reuses these.
    log_disp = jnp.log(disp + eps)               # L1 = log(disp + eps)
    log_disp_mean = jnp.log(disp + mean + eps)   # L2 = log(disp + mean + eps)
    log_mean = jnp.log(mean + eps)               # L3 = log(mean + eps)

    # lgamma(disp + eps) = lgamma(disp + 1 + eps) - log(disp + eps): keeps the
    # Lanczos argument >= 1 (finite as disp -> 0) and reuses L1 for free.
    m1, a1 = _lgamma_parts(disp + (1.0 + eps))
    m2, a2 = _lgamma_parts(x + 1.0)
    m3, a3 = _lgamma_parts(x + disp + eps)
    # One shared log of the Lanczos-series ratio (1 log + 1 recip vs 3 logs).
    t1 = (m1 - log_disp) + m2 - m3 + jnp.log(a1 * a2 * _recip_nr(a3))

    # t2 = (disp+x)*log(1+mean/(disp+eps)) + x*(log(disp+eps) - log(mean+eps))
    #    = disp*(L2 - L1) + x*(L2 - L3)            (no divide; shared logs)
    u = disp * (log_disp_mean - log_disp)
    t2 = u + x * (log_disp_mean - log_mean)

    # zero_nb = (disp/(disp+mean+eps))**disp == exp(-u)   (up to O(eps)).
    zero_nb = jnp.exp(-u)

    is_zero = x <= 1e-08
    # Fused branch log: nb_case = (t1+t2) - log(1-pi+eps);
    #                   zero_case = -log(pi + (1-pi)*zero_nb + eps).
    log_arg = jnp.where(is_zero, pi + (1.0 - pi) * zero_nb + eps,
                        1.0 - pi + eps)
    result = jnp.where(is_zero, 0.0, t1 + t2) - jnp.log(log_arg)
    if ridge_lambda > 0.0:
        result = result + ridge_lambda * (pi * pi)

    def fold_rows(res):
        # Fold rows into the resident (8, tg) accumulator with sublane-aligned
        # static slices (pure VPU adds); the cross-lane reduction happens once,
        # outside the kernel.
        partial = res[0:8, :]
        for r in range(1, tm // 8):
            partial = partial + res[r * 8:(r + 1) * 8, :]
        out_ref[...] += partial

    if mask_rows or mask_cols:
        # Padding masks only run on boundary blocks (pl.when gate); interior
        # blocks accumulate unmasked.
        row0 = (pl.program_id(0) * pl.num_programs(2) + j) * tm
        col0 = pl.program_id(1) * tg
        conds = []
        if mask_rows:
            conds.append(row0 + tm > n_valid)
        if mask_cols:
            conds.append(col0 + tg > g_valid)
        is_edge = conds[0]
        for c in conds[1:]:
            is_edge = jnp.logical_or(is_edge, c)

        @pl.when(is_edge)
        def _edge():
            valid = None
            if mask_rows:
                rows = row0 + jax.lax.broadcasted_iota(jnp.int32, (tm, tg), 0)
                valid = rows < n_valid
            if mask_cols:
                cols = col0 + jax.lax.broadcasted_iota(jnp.int32, (tm, tg), 1)
                cmask = cols < g_valid
                valid = cmask if valid is None else valid & cmask
            fold_rows(jnp.where(valid, result, 0.0))

        @pl.when(jnp.logical_not(is_edge))
        def _dense():
            fold_rows(result)
    else:
        fold_rows(result)


# ---------------------------------------------------------------------------
# Wrapper
# ---------------------------------------------------------------------------
_MAX_TM = 512                       # hard cap on the row tile
_MAX_TG = 2048                      # hard cap on the gene (lane) tile
_LIVE_F32_PER_ELEM = 40             # dbl-buffered inputs + elementwise temps


def _device_kind():
    try:
        return jax.devices()[0].device_kind.lower()
    except Exception:
        return ""


def _default_num_core_splits():
    # Only v7x has 2 TensorCores per chip; on v5e/v6e a 2-way leading split is
    # just a serial grid loop plus (potentially) a fully-masked extra row block.
    return 2 if "v7" in _device_kind() else 1


def _vmem_budget_and_limit():
    kind = _device_kind()
    if ("v5" in kind) or ("v6" in kind):
        # 128 MiB physical VMEM: bigger tiles, generous scoped limit.
        return 48 * 1024 * 1024, 96 * 1024 * 1024
    # v7x (64 MiB per TensorCore) or unknown chip: conservative, known-good.
    return 24 * 1024 * 1024, 40 * 1024 * 1024


def _round_up(v, m):
    return -(-v // m) * m


def zinb_loss(x, mean, disp, pi, scale_factor, ridge_lambda=0.0, *,
              max_tm=_MAX_TM, max_tg=_MAX_TG, num_core_splits=None):
    """ZINB loss (scalar) — Pallas TPU implementation of ZINBLoss.forward."""
    n, g = x.shape
    if num_core_splits is None:
        num_core_splits = _default_num_core_splits()
    ncores = max(1, int(num_core_splits))
    vmem_budget, vmem_limit = _vmem_budget_and_limit()

    # --- tile sizes (lane-dense, VMEM-budget aware) -------------------------
    tg = min(_round_up(g, 128), _round_up(max_tg, 128))
    tm_budget = (vmem_budget // (_LIVE_F32_PER_ELEM * 4 * tg)) // 8 * 8
    tm = max(8, min(max_tm, _round_up(n, 8), max(8, tm_budget)))

    nbg = -(-_round_up(g, 128) // tg)
    g_pad = nbg * tg
    nb_rows = -(-n // tm)
    nbj = -(-nb_rows // ncores)
    n_pad = ncores * nbj * tm

    # Fold scale_factor into mean once, outside the kernel (drops the (tm, 1)
    # side-input DMA and the in-kernel broadcast multiply).
    sf = jnp.broadcast_to(jnp.asarray(scale_factor, jnp.float32).reshape(-1), (n,))
    mean = jnp.asarray(mean, jnp.float32) * sf[:, None]

    # --- pad to full blocks (benign values; masked out inside the kernel) ---
    def pad2(a, val):
        return jnp.pad(jnp.asarray(a, jnp.float32),
                       ((0, n_pad - n), (0, g_pad - g)), constant_values=val)

    xp, meanp = pad2(x, 1.0), pad2(mean, 1.0)
    dispp, pip = pad2(disp, 1.0), pad2(pi, 0.5)

    kernel = functools.partial(
        _zinb_kernel, ridge_lambda=float(ridge_lambda),
        n_valid=n, g_valid=g,
        mask_rows=(n_pad != n), mask_cols=(g_pad != g))

    dense_spec = pl.BlockSpec((tm, tg), lambda c, gb, j: (c * nbj + j, gb))
    out_spec = pl.BlockSpec((8, tg), lambda c, gb, j: (c, gb))

    partials = pl.pallas_call(
        kernel,
        out_shape=jax.ShapeDtypeStruct((ncores * 8, g_pad), jnp.float32),
        grid_spec=pltpu.PrefetchScalarGridSpec(
            num_scalar_prefetch=0,
            grid=(ncores, nbg, nbj),
            in_specs=[dense_spec, dense_spec, dense_spec, dense_spec],
            out_specs=out_spec),
        compiler_params=pltpu.CompilerParams(
            # TODO(synk): on v7x, verify the leading size-2 axis actually shards
            # across both TensorCores; switch to pltpu.CORE_PARALLEL if not.
            dimension_semantics=("parallel", "parallel", "arbitrary"),
            vmem_limit_bytes=vmem_limit),
    )(xp, meanp, dispp, pip)

    return jnp.sum(partials) / jnp.float32(n * g)


# ---------------------------------------------------------------------------
# Pure-JAX reference (mirrors the PyTorch forward exactly).
# ---------------------------------------------------------------------------
def zinb_loss_ref(x, mean, disp, pi, scale_factor, ridge_lambda=0.0):
    eps = 1e-10
    mean = mean * scale_factor[:, None]
    t1 = (jax.lax.lgamma(disp + eps) + jax.lax.lgamma(x + 1.0)
          - jax.lax.lgamma(x + disp + eps))
    t2 = ((disp + x) * jnp.log(1.0 + mean / (disp + eps))
          + x * (jnp.log(disp + eps) - jnp.log(mean + eps)))
    nb_case = t1 + t2 - jnp.log(1.0 - pi + eps)
    zero_nb = jnp.power(disp / (disp + mean + eps), disp)
    zero_case = -jnp.log(pi + (1.0 - pi) * zero_nb + eps)
    result = jnp.where(x <= 1e-08, zero_case, nb_case)
    if ridge_lambda > 0:
        result = result + ridge_lambda * jnp.square(pi)
    return jnp.mean(result)


if __name__ == "__main__":
    key = jax.random.PRNGKey(0)
    k1, k2, k3, k4, k5, k6 = jax.random.split(key, 6)

    N, G = 48, 200  # cells x genes (G deliberately NOT a multiple of 128)
    # Count-like data with exact zeros (exercises both branches of the where).
    x_raw = jax.random.poisson(k1, lam=1.5, shape=(N, G)).astype(jnp.float32)
    zero_mask = jax.random.bernoulli(k6, p=0.3, shape=(N, G))
    x = jnp.where(zero_mask, 0.0, x_raw)
    mean = jax.random.uniform(k2, (N, G), jnp.float32, 0.1, 5.0)
    disp = jax.random.uniform(k3, (N, G), jnp.float32, 0.5, 2.0)
    pi = jax.random.uniform(k4, (N, G), jnp.float32, 0.05, 0.95)
    scale_factor = jax.random.uniform(k5, (N,), jnp.float32, 0.5, 1.5)

    ridge = 0.1
    ref = zinb_loss_ref(x, mean, disp, pi, scale_factor, ridge)
    ref0 = zinb_loss_ref(x, mean, disp, pi, scale_factor, 0.0)

    # Default tiling (gene padding masked in-kernel; row padding only if the
    # chip has a 2-way core split).
    out = jax.block_until_ready(zinb_loss(x, mean, disp, pi, scale_factor, ridge))
    assert jnp.isfinite(out), "kernel produced non-finite loss"
    assert jnp.allclose(out, ref, rtol=1e-3, atol=1e-3), (out, ref)

    # Forced multi-block tiling: exercises accumulation across row blocks and
    # gene blocks plus the edge/interior mask gating.
    out_small = jax.block_until_ready(
        zinb_loss(x, mean, disp, pi, scale_factor, ridge, max_tm=8, max_tg=128))
    assert jnp.allclose(out_small, ref, rtol=1e-3, atol=1e-3), (out_small, ref)

    # ridge_lambda == 0 branch.
    out0 = jax.block_until_ready(zinb_loss(x, mean, disp, pi, scale_factor, 0.0))
    assert jnp.allclose(out0, ref0, rtol=1e-3, atol=1e-3), (out0, ref0)

    print("KERNEL_OK")
</pallas_src>

<mosaic_0001>
module attributes {stable_mosaic.version = 11 : i64} {
  func.func @_zinb_kernel(%arg0: i32, %arg1: i32, %arg2: i32, %arg3: memref<48x256xf32, #tpu.memory_space<vmem>>, %arg4: memref<48x256xf32, #tpu.memory_space<vmem>>, %arg5: memref<48x256xf32, #tpu.memory_space<vmem>>, %arg6: memref<48x256xf32, #tpu.memory_space<vmem>>, %arg7: memref<8x256xf32, #tpu.memory_space<vmem>>) attributes {dimension_semantics = [#tpu.dimension_semantics<parallel>, #tpu.dimension_semantics<parallel>, #tpu.dimension_semantics<arbitrary>], iteration_bounds = array<i64: 1, 1, 1>, scalar_prefetch = 0 : i64, scratch_operands = 0 : i64, tpu.core_type = #tpu.core_type<tc>, window_params = [{transform_indices = @transform_0, window_bounds = array<i64: 48, 256>}, {transform_indices = @transform_1, window_bounds = array<i64: 48, 256>}, {transform_indices = @transform_2, window_bounds = array<i64: 48, 256>}, {transform_indices = @transform_3, window_bounds = array<i64: 48, 256>}, {transform_indices = @transform_4, window_bounds = array<i64: 8, 256>}]} {
    %c0_i32 = arith.constant 0 : i32
    %0 = arith.cmpi eq, %arg2, %c0_i32 : i32
    %1 = arith.extui %0 : i1 to i32
    %c0_i32_0 = arith.constant 0 : i32
    %2 = arith.cmpi ne, %1, %c0_i32_0 : i32
    scf.if %2 {
      %cst_97 = arith.constant 0.000000e+00 : f32
      %278 = vector.broadcast %cst_97 : f32 to vector<8x256xf32>
      %c0_98 = arith.constant 0 : index
      %c0_99 = arith.constant 0 : index
      %279 = vector.load %arg7[%c0_98, %c0_99] : memref<8x256xf32, #tpu.memory_space<vmem>>, vector<8x256xf32>
      tpu.vector_store %arg7[%c0_98, %c0_99], %278 {strides = array<i32>} : memref<8x256xf32, #tpu.memory_space<vmem>>, vector<8x256xf32>,
    } else {
    }
    %c0 = arith.constant 0 : index
    %c0_1 = arith.constant 0 : index
    %3 = vector.load %arg3[%c0, %c0_1] : memref<48x256xf32, #tpu.memory_space<vmem>>, vector<48x256xf32>
    %c0_2 = arith.constant 0 : index
    %c0_3 = arith.constant 0 : index
    %4 = vector.load %arg5[%c0_2, %c0_3] : memref<48x256xf32, #tpu.memory_space<vmem>>, vector<48x256xf32>
    %c0_4 = arith.constant 0 : index
    %c0_5 = arith.constant 0 : index
    %5 = vector.load %arg6[%c0_4, %c0_5] : memref<48x256xf32, #tpu.memory_space<vmem>>, vector<48x256xf32>
    %c0_6 = arith.constant 0 : index
    %c0_7 = arith.constant 0 : index
    %6 = vector.load %arg4[%c0_6, %c0_7] : memref<48x256xf32, #tpu.memory_space<vmem>>, vector<48x256xf32>
    %cst = arith.constant 1.000000e-10 : f32
    %7 = vector.broadcast %cst : f32 to vector<48x256xf32>
    %8 = arith.addf %4, %7 : vector<48x256xf32>
    %9 = math.log %8 : vector<48x256xf32>
    %10 = arith.addf %4, %6 : vector<48x256xf32>
    %cst_8 = arith.constant 1.000000e-10 : f32
    %11 = vector.broadcast %cst_8 : f32 to vector<48x256xf32>
    %12 = arith.addf %10, %11 : vector<48x256xf32>
    %13 = math.log %12 : vector<48x256xf32>
    %cst_9 = arith.constant 1.000000e-10 : f32
    %14 = vector.broadcast %cst_9 : f32 to vector<48x256xf32>
    %15 = arith.addf %6, %14 : vector<48x256xf32>
    %16 = math.log %15 : vector<48x256xf32>
    %cst_10 = arith.constant 1.000000e+00 : f32
    %17 = vector.broadcast %cst_10 : f32 to vector<48x256xf32>
    %18 = arith.addf %4, %17 : vector<48x256xf32>
    %cst_11 = arith.constant 1.000000e+00 : f32
    %19 = vector.broadcast %cst_11 : f32 to vector<48x256xf32>
    %20 = arith.subf %18, %19 : vector<48x256xf32>
    %cst_12 = arith.constant 3.000000e+04 : f32
    %21 = vector.broadcast %cst_12 : f32 to vector<48x256xf32>
    %22 = arith.minimumf %20, %21 : vector<48x256xf32>
    %cst_13 = arith.constant 24.458334 : f32
    %23 = vector.broadcast %cst_13 : f32 to vector<48x256xf32>
    %24 = arith.mulf %23, %22 : vector<48x256xf32>
    %cst_14 = arith.constant 1053.04248 : f32
    %25 = vector.broadcast %cst_14 : f32 to vector<48x256xf32>
    %26 = arith.addf %24, %25 : vector<48x256xf32>
    %27 = arith.mulf %26, %22 : vector<48x256xf32>
    %cst_15 = arith.constant 19629.5098 : f32
    %28 = vector.broadcast %cst_15 : f32 to vector<48x256xf32>
    %29 = arith.addf %27, %28 : vector<48x256xf32>
    %30 = arith.mulf %29, %22 : vector<48x256xf32>
    %cst_16 = arith.constant 205786.219 : f32
    %31 = vector.broadcast %cst_16 : f32 to vector<48x256xf32>
    %32 = arith.addf %30, %31 : vector<48x256xf32>
    %33 = arith.mulf %32, %22 : vector<48x256xf32>
    %cst_17 = arith.constant 1312212.25 : f32
    %34 = vector.broadcast %cst_17 : f32 to vector<48x256xf32>
    %35 = arith.addf %33, %34 : vector<48x256xf32>
    %36 = arith.mulf %35, %22 : vector<48x256xf32>
    %cst_18 = arith.constant 0x4A9B6B12 : f32
    %37 = vector.broadcast %cst_18 : f32 to vector<48x256xf32>
    %38 = arith.addf %36, %37 : vector<48x256xf32>
    %39 = arith.mulf %38, %22 : vector<48x256xf32>
    %cst_19 = arith.constant 0x4B29F141 : f32
    %40 = vector.broadcast %cst_19 : f32 to vector<48x256xf32>
    %41 = arith.addf %39, %40 : vector<48x256xf32>
    %42 = arith.mulf %41, %22 : vector<48x256xf32>
    %cst_20 = arith.constant 0x4B216D5A : f32
    %43 = vector.broadcast %cst_20 : f32 to vector<48x256xf32>
    %44 = arith.addf %42, %43 : vector<48x256xf32>
    %cst_21 = arith.constant 1.000000e+00 : f32
    %45 = vector.broadcast %cst_21 : f32 to vector<48x256xf32>
    %46 = arith.mulf %45, %22 : vector<48x256xf32>
    %cst_22 = arith.constant 3.600000e+01 : f32
    %47 = vector.broadcast %cst_22 : f32 to vector<48x256xf32>
    %48 = arith.addf %46, %47 : vector<48x256xf32>
    %49 = arith.mulf %48, %22 : vector<48x256xf32>
    %cst_23 = arith.constant 5.460000e+02 : f32
    %50 = vector.broadcast %cst_23 : f32 to vector<48x256xf32>
    %51 = arith.addf %49, %50 : vector<48x256xf32>
    %52 = arith.mulf %51, %22 : vector<48x256xf32>
    %cst_24 = arith.constant 4.536000e+03 : f32
    %53 = vector.broadcast %cst_24 : f32 to vector<48x256xf32>
    %54 = arith.addf %52, %53 : vector<48x256xf32>
    %55 = arith.mulf %54, %22 : vector<48x256xf32>
    %cst_25 = arith.constant 2.244900e+04 : f32
    %56 = vector.broadcast %cst_25 : f32 to vector<48x256xf32>
    %57 = arith.addf %55, %56 : vector<48x256xf32>
    %58 = arith.mulf %57, %22 : vector<48x256xf32>
    %cst_26 = arith.constant 6.728400e+04 : f32
    %59 = vector.broadcast %cst_26 : f32 to vector<48x256xf32>
    %60 = arith.addf %58, %59 : vector<48x256xf32>
    %61 = arith.mulf %60, %22 : vector<48x256xf32>
    %cst_27 = arith.constant 1.181240e+05 : f32
    %62 = vector.broadcast %cst_27 : f32 to vector<48x256xf32>
    %63 = arith.addf %61, %62 : vector<48x256xf32>
    %64 = arith.mulf %63, %22 : vector<48x256xf32>
    %cst_28 = arith.constant 1.095840e+05 : f32
    %65 = vector.broadcast %cst_28 : f32 to vector<48x256xf32>
    %66 = arith.addf %64, %65 : vector<48x256xf32>
    %67 = arith.mulf %66, %22 : vector<48x256xf32>
    %cst_29 = arith.constant 4.032000e+04 : f32
    %68 = vector.broadcast %cst_29 : f32 to vector<48x256xf32>
    %69 = arith.addf %67, %68 : vector<48x256xf32>
    %70 = tpu.reciprocal %69 {approx = true} : vector<48x256xf32> -> vector<48x256xf32>
    %71 = arith.mulf %69, %70 : vector<48x256xf32>
    %cst_30 = arith.constant 2.000000e+00 : f32
    %72 = vector.broadcast %cst_30 : f32 to vector<48x256xf32>
    %73 = arith.subf %72, %71 : vector<48x256xf32>
    %74 = arith.mulf %70, %73 : vector<48x256xf32>
    %75 = arith.mulf %44, %74 : vector<48x256xf32>
    %cst_31 = arith.constant 1.000000e+00 : f32
    %76 = vector.broadcast %cst_31 : f32 to vector<48x256xf32>
    %77 = arith.addf %76, %75 : vector<48x256xf32>
    %cst_32 = arith.constant 6.500000e+00 : f32
    %78 = vector.broadcast %cst_32 : f32 to vector<48x256xf32>
    %79 = arith.addf %18, %78 : vector<48x256xf32>
    %cst_33 = arith.constant 5.000000e-01 : f32
    %80 = vector.broadcast %cst_33 : f32 to vector<48x256xf32>
    %81 = arith.subf %18, %80 : vector<48x256xf32>
    %82 = math.log %79 : vector<48x256xf32>
    %83 = arith.mulf %81, %82 : vector<48x256xf32>
    %cst_34 = arith.constant 0.918938517 : f32
    %84 = vector.broadcast %cst_34 : f32 to vector<48x256xf32>
    %85 = arith.addf %84, %83 : vector<48x256xf32>
    %86 = arith.subf %85, %79 : vector<48x256xf32>
    %cst_35 = arith.constant 1.000000e+00 : f32
    %87 = vector.broadcast %cst_35 : f32 to vector<48x256xf32>
    %88 = arith.addf %3, %87 : vector<48x256xf32>
    %cst_36 = arith.constant 1.000000e+00 : f32
    %89 = vector.broadcast %cst_36 : f32 to vector<48x256xf32>
    %90 = arith.subf %88, %89 : vector<48x256xf32>
    %cst_37 = arith.constant 3.000000e+04 : f32
    %91 = vector.broadcast %cst_37 : f32 to vector<48x256xf32>
    %92 = arith.minimumf %90, %91 : vector<48x256xf32>
    %cst_38 = arith.constant 24.458334 : f32
    %93 = vector.broadcast %cst_38 : f32 to vector<48x256xf32>
    %94 = arith.mulf %93, %92 : vector<48x256xf32>
    %cst_39 = arith.constant 1053.04248 : f32
    %95 = vector.broadcast %cst_39 : f32 to vector<48x256xf32>
    %96 = arith.addf %94, %95 : vector<48x256xf32>
    %97 = arith.mulf %96, %92 : vector<48x256xf32>
    %cst_40 = arith.constant 19629.5098 : f32
    %98 = vector.broadcast %cst_40 : f32 to vector<48x256xf32>
    %99 = arith.addf %97, %98 : vector<48x256xf32>
    %100 = arith.mulf %99, %92 : vector<48x256xf32>
    %cst_41 = arith.constant 205786.219 : f32
    %101 = vector.broadcast %cst_41 : f32 to vector<48x256xf32>
    %102 = arith.addf %100, %101 : vector<48x256xf32>
    %103 = arith.mulf %102, %92 : vector<48x256xf32>
    %cst_42 = arith.constant 1312212.25 : f32
    %104 = vector.broadcast %cst_42 : f32 to vector<48x256xf32>
    %105 = arith.addf %103, %104 : vector<48x256xf32>
    %106 = arith.mulf %105, %92 : vector<48x256xf32>
    %cst_43 = arith.constant 0x4A9B6B12 : f32
    %107 = vector.broadcast %cst_43 : f32 to vector<48x256xf32>
    %108 = arith.addf %106, %107 : vector<48x256xf32>
    %109 = arith.mulf %108, %92 : vector<48x256xf32>
    %cst_44 = arith.constant 0x4B29F141 : f32
    %110 = vector.broadcast %cst_44 : f32 to vector<48x256xf32>
    %111 = arith.addf %109, %110 : vector<48x256xf32>
    %112 = arith.mulf %111, %92 : vector<48x256xf32>
    %cst_45 = arith.constant 0x4B216D5A : f32
    %113 = vector.broadcast %cst_45 : f32 to vector<48x256xf32>
    %114 = arith.addf %112, %113 : vector<48x256xf32>
    %cst_46 = arith.constant 1.000000e+00 : f32
    %115 = vector.broadcast %cst_46 : f32 to vector<48x256xf32>
    %116 = arith.mulf %115, %92 : vector<48x256xf32>
    %cst_47 = arith.constant 3.600000e+01 : f32
    %117 = vector.broadcast %cst_47 : f32 to vector<48x256xf32>
    %118 = arith.addf %116, %117 : vector<48x256xf32>
    %119 = arith.mulf %118, %92 : vector<48x256xf32>
    %cst_48 = arith.constant 5.460000e+02 : f32
    %120 = vector.broadcast %cst_48 : f32 to vector<48x256xf32>
    %121 = arith.addf %119, %120 : vector<48x256xf32>
    %122 = arith.mulf %121, %92 : vector<48x256xf32>
    %cst_49 = arith.constant 4.536000e+03 : f32
    %123 = vector.broadcast %cst_49 : f32 to vector<48x256xf32>
    %124 = arith.addf %122, %123 : vector<48x256xf32>
    %125 = arith.mulf %124, %92 : vector<48x256xf32>
    %cst_50 = arith.constant 2.244900e+04 : f32
    %126 = vector.broadcast %cst_50 : f32 to vector<48x256xf32>
    %127 = arith.addf %125, %126 : vector<48x256xf32>
    %128 = arith.mulf %127, %92 : vector<48x256xf32>
    %cst_51 = arith.constant 6.728400e+04 : f32
    %129 = vector.broadcast %cst_51 : f32 to vector<48x256xf32>
    %130 = arith.addf %128, %129 : vector<48x256xf32>
    %131 = arith.mulf %130, %92 : vector<48x256xf32>
    %cst_52 = arith.constant 1.181240e+05 : f32
    %132 = vector.broadcast %cst_52 : f32 to vector<48x256xf32>
    %133 = arith.addf %131, %132 : vector<48x256xf32>
    %134 = arith.mulf %133, %92 : vector<48x256xf32>
    %cst_53 = arith.constant 1.095840e+05 : f32
    %135 = vector.broadcast %cst_53 : f32 to vector<48x256xf32>
    %136 = arith.addf %134, %135 : vector<48x256xf32>
    %137 = arith.mulf %136, %92 : vector<48x256xf32>
    %cst_54 = arith.constant 4.032000e+04 : f32
    %138 = vector.broadcast %cst_54 : f32 to vector<48x256xf32>
    %139 = arith.addf %137, %138 : vector<48x256xf32>
    %140 = tpu.reciprocal %139 {approx = true} : vector<48x256xf32> -> vector<48x256xf32>
    %141 = arith.mulf %139, %140 : vector<48x256xf32>
    %cst_55 = arith.constant 2.000000e+00 : f32
    %142 = vector.broadcast %cst_55 : f32 to vector<48x256xf32>
    %143 = arith.subf %142, %141 : vector<48x256xf32>
    %144 = arith.mulf %140, %143 : vector<48x256xf32>
    %145 = arith.mulf %114, %144 : vector<48x256xf32>
    %cst_56 = arith.constant 1.000000e+00 : f32
    %146 = vector.broadcast %cst_56 : f32 to vector<48x256xf32>
    %147 = arith.addf %146, %145 : vector<48x256xf32>
    %cst_57 = arith.constant 6.500000e+00 : f32
    %148 = vector.broadcast %cst_57 : f32 to vector<48x256xf32>
    %149 = arith.addf %88, %148 : vector<48x256xf32>
    %cst_58 = arith.constant 5.000000e-01 : f32
    %150 = vector.broadcast %cst_58 : f32 to vector<48x256xf32>
    %151 = arith.subf %88, %150 : vector<48x256xf32>
    %152 = math.log %149 : vector<48x256xf32>
    %153 = arith.mulf %151, %152 : vector<48x256xf32>
    %cst_59 = arith.constant 0.918938517 : f32
    %154 = vector.broadcast %cst_59 : f32 to vector<48x256xf32>
    %155 = arith.addf %154, %153 : vector<48x256xf32>
    %156 = arith.subf %155, %149 : vector<48x256xf32>
    %157 = arith.addf %3, %4 : vector<48x256xf32>
    %cst_60 = arith.constant 1.000000e-10 : f32
    %158 = vector.broadcast %cst_60 : f32 to vector<48x256xf32>
    %159 = arith.addf %157, %158 : vector<48x256xf32>
    %cst_61 = arith.constant 1.000000e+00 : f32
    %160 = vector.broadcast %cst_61 : f32 to vector<48x256xf32>
    %161 = arith.subf %159, %160 : vector<48x256xf32>
    %cst_62 = arith.constant 3.000000e+04 : f32
    %162 = vector.broadcast %cst_62 : f32 to vector<48x256xf32>
    %163 = arith.minimumf %161, %162 : vector<48x256xf32>
    %cst_63 = arith.constant 24.458334 : f32
    %164 = vector.broadcast %cst_63 : f32 to vector<48x256xf32>
    %165 = arith.mulf %164, %163 : vector<48x256xf32>
    %cst_64 = arith.constant 1053.04248 : f32
    %166 = vector.broadcast %cst_64 : f32 to vector<48x256xf32>
    %167 = arith.addf %165, %166 : vector<48x256xf32>
    %168 = arith.mulf %167, %163 : vector<48x256xf32>
    %cst_65 = arith.constant 19629.5098 : f32
    %169 = vector.broadcast %cst_65 : f32 to vector<48x256xf32>
    %170 = arith.addf %168, %169 : vector<48x256xf32>
    %171 = arith.mulf %170, %163 : vector<48x256xf32>
    %cst_66 = arith.constant 205786.219 : f32
    %172 = vector.broadcast %cst_66 : f32 to vector<48x256xf32>
    %173 = arith.addf %171, %172 : vector<48x256xf32>
    %174 = arith.mulf %173, %163 : vector<48x256xf32>
    %cst_67 = arith.constant 1312212.25 : f32
    %175 = vector.broadcast %cst_67 : f32 to vector<48x256xf32>
    %176 = arith.addf %174, %175 : vector<48x256xf32>
    %177 = arith.mulf %176, %163 : vector<48x256xf32>
    %cst_68 = arith.constant 0x4A9B6B12 : f32
    %178 = vector.broadcast %cst_68 : f32 to vector<48x256xf32>
    %179 = arith.addf %177, %178 : vector<48x256xf32>
    %180 = arith.mulf %179, %163 : vector<48x256xf32>
    %cst_69 = arith.constant 0x4B29F141 : f32
    %181 = vector.broadcast %cst_69 : f32 to vector<48x256xf32>
    %182 = arith.addf %180, %181 : vector<48x256xf32>
    %183 = arith.mulf %182, %163 : vector<48x256xf32>
    %cst_70 = arith.constant 0x4B216D5A : f32
    %184 = vector.broadcast %cst_70 : f32 to vector<48x256xf32>
    %185 = arith.addf %183, %184 : vector<48x256xf32>
    %cst_71 = arith.constant 1.000000e+00 : f32
    %186 = vector.broadcast %cst_71 : f32 to vector<48x256xf32>
    %187 = arith.mulf %186, %163 : vector<48x256xf32>
    %cst_72 = arith.constant 3.600000e+01 : f32
    %188 = vector.broadcast %cst_72 : f32 to vector<48x256xf32>
    %189 = arith.addf %187, %188 : vector<48x256xf32>
    %190 = arith.mulf %189, %163 : vector<48x256xf32>
    %cst_73 = arith.constant 5.460000e+02 : f32
    %191 = vector.broadcast %cst_73 : f32 to vector<48x256xf32>
    %192 = arith.addf %190, %191 : vector<48x256xf32>
    %193 = arith.mulf %192, %163 : vector<48x256xf32>
    %cst_74 = arith.constant 4.536000e+03 : f32
    %194 = vector.broadcast %cst_74 : f32 to vector<48x256xf32>
    %195 = arith.addf %193, %194 : vector<48x256xf32>
    %196 = arith.mulf %195, %163 : vector<48x256xf32>
    %cst_75 = arith.constant 2.244900e+04 : f32
    %197 = vector.broadcast %cst_75 : f32 to vector<48x256xf32>
    %198 = arith.addf %196, %197 : vector<48x256xf32>
    %199 = arith.mulf %198, %163 : vector<48x256xf32>
    %cst_76 = arith.constant 6.728400e+04 : f32
    %200 = vector.broadcast %cst_76 : f32 to vector<48x256xf32>
    %201 = arith.addf %199, %200 : vector<48x256xf32>
    %202 = arith.mulf %201, %163 : vector<48x256xf32>
    %cst_77 = arith.constant 1.181240e+05 : f32
    %203 = vector.broadcast %cst_77 : f32 to vector<48x256xf32>
    %204 = arith.addf %202, %203 : vector<48x256xf32>
    %205 = arith.mulf %204, %163 : vector<48x256xf32>
    %cst_78 = arith.constant 1.095840e+05 : f32
    %206 = vector.broadcast %cst_78 : f32 to vector<48x256xf32>
    %207 = arith.addf %205, %206 : vector<48x256xf32>
    %208 = arith.mulf %207, %163 : vector<48x256xf32>
    %cst_79 = arith.constant 4.032000e+04 : f32
    %209 = vector.broadcast %cst_79 : f32 to vector<48x256xf32>
    %210 = arith.addf %208, %209 : vector<48x256xf32>
    %211 = tpu.reciprocal %210 {approx = true} : vector<48x256xf32> -> vector<48x256xf32>
    %212 = arith.mulf %210, %211 : vector<48x256xf32>
    %cst_80 = arith.constant 2.000000e+00 : f32
    %213 = vector.broadcast %cst_80 : f32 to vector<48x256xf32>
    %214 = arith.subf %213, %212 : vector<48x256xf32>
    %215 = arith.mulf %211, %214 : vector<48x256xf32>
    %216 = arith.mulf %185, %215 : vector<48x256xf32>
    %cst_81 = arith.constant 1.000000e+00 : f32
    %217 = vector.broadcast %cst_81 : f32 to vector<48x256xf32>
    %218 = arith.addf %217, %216 : vector<48x256xf32>
    %cst_82 = arith.constant 6.500000e+00 : f32
    %219 = vector.broadcast %cst_82 : f32 to vector<48x256xf32>
    %220 = arith.addf %159, %219 : vector<48x256xf32>
    %cst_83 = arith.constant 5.000000e-01 : f32
    %221 = vector.broadcast %cst_83 : f32 to vector<48x256xf32>
    %222 = arith.subf %159, %221 : vector<48x256xf32>
    %223 = math.log %220 : vector<48x256xf32>
    %224 = arith.mulf %222, %223 : vector<48x256xf32>
    %cst_84 = arith.constant 0.918938517 : f32
    %225 = vector.broadcast %cst_84 : f32 to vector<48x256xf32>
    %226 = arith.addf %225, %224 : vector<48x256xf32>
    %227 = arith.subf %226, %220 : vector<48x256xf32>
    %228 = arith.subf %86, %9 : vector<48x256xf32>
    %229 = arith.addf %228, %156 : vector<48x256xf32>
    %230 = arith.subf %229, %227 : vector<48x256xf32>
    %231 = arith.mulf %77, %147 : vector<48x256xf32>
    %232 = tpu.reciprocal %218 {approx = true} : vector<48x256xf32> -> vector<48x256xf32>
    %233 = arith.mulf %218, %232 : vector<48x256xf32>
    %cst_85 = arith.constant 2.000000e+00 : f32
    %234 = vector.broadcast %cst_85 : f32 to vector<48x256xf32>
    %235 = arith.subf %234, %233 : vector<48x256xf32>
    %236 = arith.mulf %232, %235 : vector<48x256xf32>
    %237 = arith.mulf %231, %236 : vector<48x256xf32>
    %238 = math.log %237 : vector<48x256xf32>
    %239 = arith.addf %230, %238 : vector<48x256xf32>
    %240 = arith.subf %13, %9 : vector<48x256xf32>
    %241 = arith.mulf %4, %240 : vector<48x256xf32>
    %242 = arith.subf %13, %16 : vector<48x256xf32>
    %243 = arith.mulf %3, %242 : vector<48x256xf32>
    %244 = arith.addf %241, %243 : vector<48x256xf32>
    %cst_86 = arith.constant 0.000000e+00 : f32
    %245 = vector.broadcast %cst_86 : f32 to vector<48x256xf32>
    %246 = arith.subf %245, %241 : vector<48x256xf32>
    %247 = math.exp %246 : vector<48x256xf32>
    %cst_87 = arith.constant 9.99999993E-9 : f32
    %248 = vector.broadcast %cst_87 : f32 to vector<48x256xf32>
    %249 = arith.cmpf ole, %3, %248 : vector<48x256xf32>
    %cst_88 = arith.constant 1.000000e+00 : f32
    %250 = vector.broadcast %cst_88 : f32 to vector<48x256xf32>
    %251 = arith.subf %250, %5 : vector<48x256xf32>
    %252 = arith.mulf %251, %247 : vector<48x256xf32>
    %253 = arith.addf %5, %252 : vector<48x256xf32>
    %cst_89 = arith.constant 1.000000e-10 : f32
    %254 = vector.broadcast %cst_89 : f32 to vector<48x256xf32>
    %255 = arith.addf %253, %254 : vector<48x256xf32>
    %cst_90 = arith.constant 1.000000e+00 : f32
    %256 = vector.broadcast %cst_90 : f32 to vector<48x256xf32>
    %257 = arith.subf %256, %5 : vector<48x256xf32>
    %cst_91 = arith.constant 1.000000e-10 : f32
    %258 = vector.broadcast %cst_91 : f32 to vector<48x256xf32>
    %259 = arith.addf %257, %258 : vector<48x256xf32>
    %260 = arith.select %249, %255, %259 : vector<48x256xi1>, vector<48x256xf32>
    %261 = arith.addf %239, %244 : vector<48x256xf32>
    %cst_92 = arith.constant 0.000000e+00 : f32
    %262 = vector.broadcast %cst_92 : f32 to vector<48x256xf32>
    %263 = arith.select %249, %262, %261 : vector<48x256xi1>, vector<48x256xf32>
    %264 = math.log %260 : vector<48x256xf32>
    %265 = arith.subf %263, %264 : vector<48x256xf32>
    %266 = arith.mulf %5, %5 : vector<48x256xf32>
    %cst_93 = arith.constant 1.000000e-01 : f32
    %267 = vector.broadcast %cst_93 : f32 to vector<48x256xf32>
    %268 = arith.mulf %267, %266 : vector<48x256xf32>
    %269 = arith.addf %265, %268 : vector<48x256xf32>
    %c256_i32 = arith.constant 256 : i32
    %270 = arith.muli %arg1, %c256_i32 : i32
    %c256_i32_94 = arith.constant 256 : i32
    %271 = arith.addi %270, %c256_i32_94 : i32
    %c200_i32 = arith.constant 200 : i32
    %272 = arith.cmpi sgt, %271, %c200_i32 : i32
    %273 = arith.extui %272 : i1 to i32
    %c0_i32_95 = arith.constant 0 : i32
    %274 = arith.cmpi ne, %273, %c0_i32_95 : i32
    scf.if %274 {
      %278 = tpu.iota {dimensions = array<i32: 1>} : vector<48x256xi32>
      %279 = vector.broadcast %270 : i32 to vector<48x256xi32>
      %280 = arith.addi %279, %278 : vector<48x256xi32>
      %c200_i32_97 = arith.constant 200 : i32
      %281 = vector.broadcast %c200_i32_97 : i32 to vector<48x256xi32>
      %282 = arith.cmpi slt, %280, %281 : vector<48x256xi32>
      %cst_98 = arith.constant 0.000000e+00 : f32
      %283 = vector.broadcast %cst_98 : f32 to vector<48x256xf32>
      %284 = arith.select %282, %269, %283 : vector<48x256xi1>, vector<48x256xf32>
      %285 = vector.extract_strided_slice %284 {offsets = [0, 0], sizes = [8, 256], strides = [1, 1]} : vector<48x256xf32> to vector<8x256xf32>
      %286 = vector.extract_strided_slice %284 {offsets = [8, 0], sizes = [8, 256], strides = [1, 1]} : vector<48x256xf32> to vector<8x256xf32>
      %287 = arith.addf %285, %286 : vector<8x256xf32>
      %288 = vector.extract_strided_slice %284 {offsets = [16, 0], sizes = [8, 256], strides = [1, 1]} : vector<48x256xf32> to vector<8x256xf32>
      %289 = arith.addf %287, %288 : vector<8x256xf32>
      %290 = vector.extract_strided_slice %284 {offsets = [24, 0], sizes = [8, 256], strides = [1, 1]} : vector<48x256xf32> to vector<8x256xf32>
      %291 = arith.addf %289, %290 : vector<8x256xf32>
      %292 = vector.extract_strided_slice %284 {offsets = [32, 0], sizes = [8, 256], strides = [1, 1]} : vector<48x256xf32> to vector<8x256xf32>
      %293 = arith.addf %291, %292 : vector<8x256xf32>
      %294 = vector.extract_strided_slice %284 {offsets = [40, 0], sizes = [8, 256], strides = [1, 1]} : vector<48x256xf32> to vector<8x256xf32>
      %295 = arith.addf %293, %294 : vector<8x256xf32>
      %c0_99 = arith.constant 0 : index
      %c0_100 = arith.constant 0 : index
      %296 = vector.load %arg7[%c0_99, %c0_100] : memref<8x256xf32, #tpu.memory_space<vmem>>, vector<8x256xf32>
      %297 = arith.addf %296, %295 : vector<8x256xf32>
      %c0_101 = arith.constant 0 : index
      %c0_102 = arith.constant 0 : index
      %298 = vector.load %arg7[%c0_101, %c0_102] : memref<8x256xf32, #tpu.memory_space<vmem>>, vector<8x256xf32>
      tpu.vector_store %arg7[%c0_101, %c0_102], %297 {strides = array<i32>} : memref<8x256xf32, #tpu.memory_space<vmem>>, vector<8x256xf32>,
    } else {
    }
    %true = arith.constant true
    %275 = arith.xori %272, %true : i1
    %276 = arith.extui %275 : i1 to i32
    %c0_i32_96 = arith.constant 0 : i32
    %277 = arith.cmpi ne, %276, %c0_i32_96 : i32
    scf.if %277 {
      %278 = vector.extract_strided_slice %269 {offsets = [0, 0], sizes = [8, 256], strides = [1, 1]} : vector<48x256xf32> to vector<8x256xf32>
      %279 = vector.extract_strided_slice %269 {offsets = [8, 0], sizes = [8, 256], strides = [1, 1]} : vector<48x256xf32> to vector<8x256xf32>
      %280 = arith.addf %278, %279 : vector<8x256xf32>
      %281 = vector.extract_strided_slice %269 {offsets = [16, 0], sizes = [8, 256], strides = [1, 1]} : vector<48x256xf32> to vector<8x256xf32>
      %282 = arith.addf %280, %281 : vector<8x256xf32>
      %283 = vector.extract_strided_slice %269 {offsets = [24, 0], sizes = [8, 256], strides = [1, 1]} : vector<48x256xf32> to vector<8x256xf32>
      %284 = arith.addf %282, %283 : vector<8x256xf32>
      %285 = vector.extract_strided_slice %269 {offsets = [32, 0], sizes = [8, 256], strides = [1, 1]} : vector<48x256xf32> to vector<8x256xf32>
      %286 = arith.addf %284, %285 : vector<8x256xf32>
      %287 = vector.extract_strided_slice %269 {offsets = [40, 0], sizes = [8, 256], strides = [1, 1]} : vector<48x256xf32> to vector<8x256xf32>
      %288 = arith.addf %286, %287 : vector<8x256xf32>
      %c0_97 = arith.constant 0 : index
      %c0_98 = arith.constant 0 : index
      %289 = vector.load %arg7[%c0_97, %c0_98] : memref<8x256xf32, #tpu.memory_space<vmem>>, vector<8x256xf32>
      %290 = arith.addf %289, %288 : vector<8x256xf32>
      %c0_99 = arith.constant 0 : index
      %c0_100 = arith.constant 0 : index
      %291 = vector.load %arg7[%c0_99, %c0_100] : memref<8x256xf32, #tpu.memory_space<vmem>>, vector<8x256xf32>
      tpu.vector_store %arg7[%c0_99, %c0_100], %290 {strides = array<i32>} : memref<8x256xf32, #tpu.memory_space<vmem>>, vector<8x256xf32>,
    } else {
    }
    return
  }
  func.func @transform_0(%arg0: i32, %arg1: i32, %arg2: i32) -> (i32, i32) {
    %c1_i32 = arith.constant 1 : i32
    %0 = arith.muli %arg0, %c1_i32 : i32
    %1 = arith.addi %0, %arg2 : i32
    %c0_i32 = arith.constant 0 : i32
    return %1, %arg1 : i32, i32
  }
  func.func @transform_1(%arg0: i32, %arg1: i32, %arg2: i32) -> (i32, i32) {
    %c1_i32 = arith.constant 1 : i32
    %0 = arith.muli %arg0, %c1_i32 : i32
    %1 = arith.addi %0, %arg2 : i32
    %c0_i32 = arith.constant 0 : i32
    return %1, %arg1 : i32, i32
  }
  func.func @transform_2(%arg0: i32, %arg1: i32, %arg2: i32) -> (i32, i32) {
    %c1_i32 = arith.constant 1 : i32
    %0 = arith.muli %arg0, %c1_i32 : i32
    %1 = arith.addi %0, %arg2 : i32
    %c0_i32 = arith.constant 0 : i32
    return %1, %arg1 : i32, i32
  }
  func.func @transform_3(%arg0: i32, %arg1: i32, %arg2: i32) -> (i32, i32) {
    %c1_i32 = arith.constant 1 : i32
    %0 = arith.muli %arg0, %c1_i32 : i32
    %1 = arith.addi %0, %arg2 : i32
    %c0_i32 = arith.constant 0 : i32
    return %1, %arg1 : i32, i32
  }
  func.func @transform_4(%arg0: i32, %arg1: i32, %arg2: i32) -> (i32, i32) {
    %c0_i32 = arith.constant 0 : i32
    return %arg0, %arg1 : i32, i32
  }
}

</mosaic_0001>

<llo_original>
// kernel: tpu_custom_call.1
$region0: #{tpu_custom_call.1}
  #allocation0 [shape = 'u32[]', space=smem, size = 0x4, offset = 0x4, fixed_abs, tag = 'smem constant byte address 0x4 - core index']
  #allocation1 [shape = 'u32[72,128]{1,0:T(1,128)}', space=vmem, size = 0x9000, scoped, tag = 'internal scratch']
  %s0 = inlined_call_operand.hbm [shape: f32[48,256], index: 0, kind: input, shape index: {}]
  %s1 = inlined_call_operand.hbm [shape: f32[48,256], index: 1, kind: input, shape index: {}]
  %s2 = inlined_call_operand.hbm [shape: f32[48,256], index: 2, kind: input, shape index: {}]
  %s3 = inlined_call_operand.hbm [shape: f32[48,256], index: 3, kind: input, shape index: {}]
  %s4 = inlined_call_operand.hbm [shape: f32[8,256], index: 4, kind: output, shape index: {}]
  %s5 = sld [smem:[#allocation0]]
  $region54: #{tpu_custom_call.1} parent=0
    _
  %s7 = ssub.s32 1, %s5
  %s8 = scalar_select 0, %s7, %s5
  $region1: #{tpu_custom_call.1} parent=0
    #allocation2 [shape = 'u8[49152]{0}', space=vmem, size = 0xc000, scoped, tag = 'input window, operand 0, single buffered']
    #allocation3 [shape = 's32[1]{0}', space=sflag, size = 0x4, scoped, tag = 'scoped memory for tpu_custom_call.1']
    #allocation4 [shape = 's32[1]{0}', space=sflag, size = 0x4, scoped, tag = 'scoped memory for tpu_custom_call.1']
    #allocation5 [shape = 'u8[49152]{0}', space=vmem, size = 0xc000, scoped, tag = 'input window, operand 1, single buffered']
    #allocation6 [shape = 's32[1]{0}', space=sflag, size = 0x4, scoped, tag = 'scoped memory for tpu_custom_call.1']
    #allocation7 [shape = 'u8[49152]{0}', space=vmem, size = 0xc000, scoped, tag = 'input window, operand 2, single buffered']
    #allocation8 [shape = 'u8[49152]{0}', space=vmem, size = 0xc000, scoped, tag = 'input window, operand 3, single buffered']
    #allocation9 [shape = 's32[1]{0}', space=sflag, size = 0x4, scoped, tag = 'scoped memory for tpu_custom_call.1']
    #allocation10 [shape = 'u8[8192]{0}', space=vmem, size = 0x2000, scoped, tag = 'output window, operand 0, single buffered']
    %9 = vsyncpa [#allocation3], 0
    %10 = vsyncpa [#allocation6], 0
    %11 = vsyncpa [#allocation9], 0
    %12 = vsyncpa [#allocation4], 0
    // Predicated region
    $region2: #{tpu_custom_call.1} parent=1 // pred_check
      _
    $region3: #{tpu_custom_call.1} parent=1 // pred_check_branch
      %14 = sbr.rel (0) target = $region5
    $region4: #{tpu_custom_call.1} parent=1 // pred_region
      %s15 = sadd.s32 0, 0
      %s16 = smul.u32 6, %s15
      %18 = vsyncadd [#allocation3], 0
      %s19 = smul.addr %s16, 2
      %s20 = smul.addr %s19, 8
      %s21 = scalar_lea.hbm %s0, %s20
      %s22 = sshll.u32 %s21, 4
      %s23 = int_to_ptr.hbm [resolvable:$true] %s22
      %s24 = sshll.u32 [#allocation2], 4
      %s25 = int_to_ptr.vmem [resolvable:$true] %s24
      %30 = dma.hbm_to_vmem [thread:$0]  %s23, 1536, %s25, [#allocation3], 256, 256, 16
    $region5: #{tpu_custom_call.1} parent=1 // pred_fallthru
      _
    // Predicated region
    $region6: #{tpu_custom_call.1} parent=1 // pred_check
      _
    $region7: #{tpu_custom_call.1} parent=1 // pred_check_branch
      %32 = sbr.rel (0) target = $region9
    $region8: #{tpu_custom_call.1} parent=1 // pred_region
      %s33 = sadd.s32 0, 0
      %s34 = smul.u32 6, %s33
      %36 = vsyncadd [#allocation6], 0
      %s37 = smul.addr %s34, 2
      %s38 = smul.addr %s37, 8
      %s39 = scalar_lea.hbm %s1, %s38
      %s40 = sshll.u32 %s39, 4
      %s41 = int_to_ptr.hbm [resolvable:$true] %s40
      %s42 = sshll.u32 [#allocation5], 4
      %s43 = int_to_ptr.vmem [resolvable:$true] %s42
      %48 = dma.hbm_to_vmem [thread:$0]  %s41, 1536, %s43, [#allocation6], 256, 256, 16
    $region9: #{tpu_custom_call.1} parent=1 // pred_fallthru
      _
    // Predicated region
    $region10: #{tpu_custom_call.1} parent=1 // pred_check
      _
    $region11: #{tpu_custom_call.1} parent=1 // pred_check_branch
      %50 = sbr.rel (0) target = $region13
    $region12: #{tpu_custom_call.1} parent=1 // pred_region
      %s51 = sadd.s32 0, 0
      %s52 = smul.u32 6, %s51
      %54 = vsyncadd [#allocation6], 0
      %s55 = smul.addr %s52, 2
      %s56 = smul.addr %s55, 8
      %s57 = scalar_lea.hbm %s2, %s56
      %s58 = sshll.u32 %s57, 4
      %s59 = int_to_ptr.hbm [resolvable:$true] %s58
      %s60 = sshll.u32 [#allocation7], 4
      %s61 = int_to_ptr.vmem [resolvable:$true] %s60
      %66 = dma.hbm_to_vmem [thread:$0]  %s59, 1536, %s61, [#allocation6], 256, 256, 16
    $region13: #{tpu_custom_call.1} parent=1 // pred_fallthru
      _
    // Predicated region
    $region14: #{tpu_custom_call.1} parent=1 // pred_check
      _
    $region15: #{tpu_custom_call.1} parent=1 // pred_check_branch
      %68 = sbr.rel (0) target = $region17
    $region16: #{tpu_custom_call.1} parent=1 // pred_region
      %s69 = sadd.s32 0, 0
      %s70 = smul.u32 6, %s69
      %72 = vsyncadd [#allocation9], 0
      %s73 = smul.addr %s70, 2
      %s74 = smul.addr %s73, 8
      %s75 = scalar_lea.hbm %s3, %s74
      %s76 = sshll.u32 %s75, 4
      %s77 = int_to_ptr.hbm [resolvable:$true] %s76
      %s78 = sshll.u32 [#allocation8], 4
      %s79 = int_to_ptr.vmem [resolvable:$true] %s78
      %84 = dma.hbm_to_vmem [thread:$0]  %s77, 1536, %s79, [#allocation9], 256, 256, 16
    $region17: #{tpu_custom_call.1} parent=1 // pred_fallthru
      _
    // Predicated region
    $region18: #{tpu_custom_call.1} parent=1 // pred_check
      _
    $region19: #{tpu_custom_call.1} parent=1 // pred_check_branch
      %86 = sbr.rel (0) target = $region21
    $region20: #{tpu_custom_call.1} parent=1 // pred_region
      %88 = dma.done [#allocation3], 1536
    $region21: #{tpu_custom_call.1} parent=1 // pred_fallthru
      _
    // Predicated region
    $region22: #{tpu_custom_call.1} parent=1 // pred_check
      _
    $region23: #{tpu_custom_call.1} parent=1 // pred_check_branch
      %90 = sbr.rel (0) target = $region25
    $region24: #{tpu_custom_call.1} parent=1 // pred_region
      %92 = dma.done [#allocation6], 1536
    $region25: #{tpu_custom_call.1} parent=1 // pred_fallthru
      _
    // Predicated region
    $region26: #{tpu_custom_call.1} parent=1 // pred_check
      _
    $region27: #{tpu_custom_call.1} parent=1 // pred_check_branch
      %94 = sbr.rel (0) target = $region29
    $region28: #{tpu_custom_call.1} parent=1 // pred_region
      %96 = dma.done [#allocation6], 1536
    $region29: #{tpu_custom_call.1} parent=1 // pred_fallthru
      _
    // Predicated region
    $region30: #{tpu_custom_call.1} parent=1 // pred_check
      _
    $region31: #{tpu_custom_call.1} parent=1 // pred_check_branch
      %98 = sbr.rel (0) target = $region33
    $region32: #{tpu_custom_call.1} parent=1 // pred_region
      %100 = dma.done [#allocation9], 1536
    $region33: #{tpu_custom_call.1} parent=1 // pred_fallthru
      _
    %s101 = sadd.s32 0, 0
    %s102 = smul.u32 6, %s101
    %s103 = sadd.s32 0, 0
    %s104 = smul.u32 6, %s103
    %s105 = sadd.s32 0, 0
    %s106 = smul.u32 6, %s105
    %s107 = sadd.s32 0, 0
    %s108 = smul.u32 6, %s107
    %p109 = scmp.eq.s32.totalorder 0, 0
    // Predicated region
    $region34: #{tpu_custom_call.1} parent=1 // pred_check
      %p110 = pneg %p109
    $region35: #{tpu_custom_call.1} parent=1 // pred_check_branch
      %112 = sbr.rel (%p110) target = $region37
    $region36: #{tpu_custom_call.1} parent=1 // pred_region
      %113 = vst [vmem:[#allocation10] sm:$0xff] 0.0
      %114 = vst [vmem:[#allocation10 + $0x8] sm:$0xff] 0.0
    $region37: #{tpu_custom_call.1} parent=1 // pred_fallthru
      _
    %v115 = vld [vmem:[#allocation2] sm:$0xff]
    %v116 = vld [vmem:[#allocation2 + $0x8] sm:$0xff]
    %v117 = vld [vmem:[#allocation2 + $0x10] sm:$0xff]
    %v118 = vld [vmem:[#allocation2 + $0x18] sm:$0xff]
    %v119 = vld [vmem:[#allocation2 + $0x20] sm:$0xff]
    %v120 = vld [vmem:[#allocation2 + $0x28] sm:$0xff]
    %v121 = vld [vmem:[#allocation2 + $0x30] sm:$0xff]
    %v122 = vld [vmem:[#allocation2 + $0x38] sm:$0xff]
    %v123 = vld [vmem:[#allocation2 + $0x40] sm:$0xff]
    %v124 = vld [vmem:[#allocation2 + $0x48] sm:$0xff]
    %v125 = vld [vmem:[#allocation2 + $0x50] sm:$0xff]
    %v126 = vld [vmem:[#allocation2 + $0x58] sm:$0xff]
    %v127 = vld [vmem:[#allocation7] sm:$0xff]
    %v128 = vld [vmem:[#allocation7 + $0x8] sm:$0xff]
    %v129 = vld [vmem:[#allocation7 + $0x10] sm:$0xff]
    %v130 = vld [vmem:[#allocation7 + $0x18] sm:$0xff]
    %v131 = vld [vmem:[#allocation7 + $0x20] sm:$0xff]
    %v132 = vld [vmem:[#allocation7 + $0x28] sm:$0xff]
    %v133 = vld [vmem:[#allocation7 + $0x30] sm:$0xff]
    %v134 = vld [vmem:[#allocation7 + $0x38] sm:$0xff]
    %v135 = vld [vmem:[#allocation7 + $0x40] sm:$0xff]
    %v136 = vld [vmem:[#allocation7 + $0x48] sm:$0xff]
    %v137 = vld [vmem:[#allocation7 + $0x50] sm:$0xff]
    %v138 = vld [vmem:[#allocation7 + $0x58] sm:$0xff]
    %v139 = vld [vmem:[#allocation8] sm:$0xff]
    %v140 = vld [vmem:[#allocation8 + $0x8] sm:$0xff]
    %v141 = vld [vmem:[#allocation8 + $0x10] sm:$0xff]
    %v142 = vld [vmem:[#allocation8 + $0x18] sm:$0xff]
    %v143 = vld [vmem:[#allocation8 + $0x20] sm:$0xff]
    %v144 = vld [vmem:[#allocation8 + $0x28] sm:$0xff]
    %v145 = vld [vmem:[#allocation8 + $0x30] sm:$0xff]
    %v146 = vld [vmem:[#allocation8 + $0x38] sm:$0xff]
    %v147 = vld [vmem:[#allocation8 + $0x40] sm:$0xff]
    %v148 = vld [vmem:[#allocation8 + $0x48] sm:$0xff]
    %v149 = vld [vmem:[#allocation8 + $0x50] sm:$0xff]
    %v150 = vld [vmem:[#allocation8 + $0x58] sm:$0xff]
    %v151 = vld [vmem:[#allocation5] sm:$0xff]
    %v152 = vld [vmem:[#allocation5 + $0x8] sm:$0xff]
    %v153 = vld [vmem:[#allocation5 + $0x10] sm:$0xff]
    %v154 = vld [vmem:[#allocation5 + $0x18] sm:$0xff]
    %v155 = vld [vmem:[#allocation5 + $0x20] sm:$0xff]
    %v156 = vld [vmem:[#allocation5 + $0x28] sm:$0xff]
    %v157 = vld [vmem:[#allocation5 + $0x30] sm:$0xff]
    %v158 = vld [vmem:[#allocation5 + $0x38] sm:$0xff]
    %v159 = vld [vmem:[#allocation5 + $0x40] sm:$0xff]
    %v160 = vld [vmem:[#allocation5 + $0x48] sm:$0xff]
    %v161 = vld [vmem:[#allocation5 + $0x50] sm:$0xff]
    %v162 = vld [vmem:[#allocation5 + $0x58] sm:$0xff]
    %v163 = vadd.f32 %v127, 1e-10
    %v164 = vadd.f32 %v128, 1e-10
    %v165 = vadd.f32 %v129, 1e-10
    %v166 = vadd.f32 %v130, 1e-10
    %v167 = vadd.f32 %v131, 1e-10
    %v168 = vadd.f32 %v132, 1e-10
    %v169 = vadd.f32 %v133, 1e-10
    %v170 = vadd.f32 %v134, 1e-10
    %v171 = vadd.f32 %v135, 1e-10
    %v172 = vadd.f32 %v136, 1e-10
    %v173 = vadd.f32 %v137, 1e-10
    %v174 = vadd.f32 %v138, 1e-10
    %v175 = vlog2.pop %v163
    %v176 = vmul.f32 %v175, 0.6931472
    %v177 = vlog2.pop %v164
    %v178 = vmul.f32 %v177, 0.6931472
    %v179 = vlog2.pop %v165
    %v180 = vmul.f32 %v179, 0.6931472
    %v181 = vlog2.pop %v166
    %v182 = vmul.f32 %v181, 0.6931472
    %v183 = vlog2.pop %v167
    %v184 = vmul.f32 %v183, 0.6931472
    %v185 = vlog2.pop %v168
    %v186 = vmul.f32 %v185, 0.6931472
    %v187 = vlog2.pop %v169
    %v188 = vmul.f32 %v187, 0.6931472
    %v189 = vlog2.pop %v170
    %v190 = vmul.f32 %v189, 0.6931472
    %v191 = vlog2.pop %v171
    %v192 = vmul.f32 %v191, 0.6931472
    %v193 = vlog2.pop %v172
    %v194 = vmul.f32 %v193, 0.6931472
    %v195 = vlog2.pop %v173
    %v196 = vmul.f32 %v195, 0.6931472
    %v197 = vlog2.pop %v174
    %v198 = vmul.f32 %v197, 0.6931472
    %v199 = vadd.f32 %v127, %v151
    %v200 = vadd.f32 %v128, %v152
    %v201 = vadd.f32 %v129, %v153
    %v202 = vadd.f32 %v130, %v154
    %v203 = vadd.f32 %v131, %v155
    %v204 = vadd.f32 %v132, %v156
    %v205 = vadd.f32 %v133, %v157
    %v206 = vadd.f32 %v134, %v158
    %v207 = vadd.f32 %v135, %v159
    %v208 = vadd.f32 %v136, %v160
    %v209 = vadd.f32 %v137, %v161
    %v210 = vadd.f32 %v138, %v162
    %v211 = vadd.f32 %v199, 1e-10
    %v212 = vadd.f32 %v200, 1e-10
    %v213 = vadd.f32 %v201, 1e-10
    %v214 = vadd.f32 %v202, 1e-10
    %v215 = vadd.f32 %v203, 1e-10
    %v216 = vadd.f32 %v204, 1e-10
    %v217 = vadd.f32 %v205, 1e-10
    %v218 = vadd.f32 %v206, 1e-10
    %v219 = vadd.f32 %v207, 1e-10
    %v220 = vadd.f32 %v208, 1e-10
    %v221 = vadd.f32 %v209, 1e-10
    %v222 = vadd.f32 %v210, 1e-10
    %v223 = vlog2.pop %v211
    %v224 = vmul.f32 %v223, 0.6931472
    %v225 = vlog2.pop %v212
    %v226 = vmul.f32 %v225, 0.6931472
    %v227 = vlog2.pop %v213
    %v228 = vmul.f32 %v227, 0.6931472
    %v229 = vlog2.pop %v214
    %v230 = vmul.f32 %v229, 0.6931472
    %v231 = vlog2.pop %v215
    %v232 = vmul.f32 %v231, 0.6931472
    %v233 = vlog2.pop %v216
    %v234 = vmul.f32 %v233, 0.6931472
    %v235 = vlog2.pop %v217
    %v236 = vmul.f32 %v235, 0.6931472
    %v237 = vlog2.pop %v218
    %v238 = vmul.f32 %v237, 0.6931472
    %v239 = vlog2.pop %v219
    %v240 = vmul.f32 %v239, 0.6931472
    %v241 = vlog2.pop %v220
    %v242 = vmul.f32 %v241, 0.6931472
    %v243 = vlog2.pop %v221
    %v244 = vmul.f32 %v243, 0.6931472
    %v245 = vlog2.pop %v222
    %v246 = vmul.f32 %v245, 0.6931472
    %v247 = vadd.f32 %v151, 1e-10
    %v248 = vadd.f32 %v152, 1e-10
    %v249 = vadd.f32 %v153, 1e-10
    %v250 = vadd.f32 %v154, 1e-10
    %v251 = vadd.f32 %v155, 1e-10
    %v252 = vadd.f32 %v156, 1e-10
    %v253 = vadd.f32 %v157, 1e-10
    %v254 = vadd.f32 %v158, 1e-10
    %v255 = vadd.f32 %v159, 1e-10
    %v256 = vadd.f32 %v160, 1e-10
    %v257 = vadd.f32 %v161, 1e-10
    %v258 = vadd.f32 %v162, 1e-10
    %v259 = vlog2.pop %v247
    %v260 = vmul.f32 %v259, 0.6931472
    %v261 = vlog2.pop %v248
    %v262 = vmul.f32 %v261, 0.6931472
    %v263 = vlog2.pop %v249
    %v264 = vmul.f32 %v263, 0.6931472
    %v265 = vlog2.pop %v250
    %v266 = vmul.f32 %v265, 0.6931472
    %v267 = vlog2.pop %v251
    %v268 = vmul.f32 %v267, 0.6931472
    %v269 = vlog2.pop %v252
    %v270 = vmul.f32 %v269, 0.6931472
    %v271 = vlog2.pop %v253
    %v272 = vmul.f32 %v271, 0.6931472
    %v273 = vlog2.pop %v254
    %v274 = vmul.f32 %v273, 0.6931472
    %v275 = vlog2.pop %v255
    %v276 = vmul.f32 %v275, 0.6931472
    %v277 = vlog2.pop %v256
    %v278 = vmul.f32 %v277, 0.6931472
    %v279 = vlog2.pop %v257
    %v280 = vmul.f32 %v279, 0.6931472
    %v281 = vlog2.pop %v258
    %v282 = vmul.f32 %v281, 0.6931472
    %v283 = vadd.f32 %v127, 1.0
    %v284 = vadd.f32 %v128, 1.0
    %v285 = vadd.f32 %v129, 1.0
    %v286 = vadd.f32 %v130, 1.0
    %v287 = vadd.f32 %v131, 1.0
    %v288 = vadd.f32 %v132, 1.0
    %v289 = vadd.f32 %v133, 1.0
    %v290 = vadd.f32 %v134, 1.0
    %v291 = vadd.f32 %v135, 1.0
    %v292 = vadd.f32 %v136, 1.0
    %v293 = vadd.f32 %v137, 1.0
    %v294 = vadd.f32 %v138, 1.0
    %v295 = vsub.f32 %v283, 1.0
    %v296 = vsub.f32 %v284, 1.0
    %v297 = vsub.f32 %v285, 1.0
    %v298 = vsub.f32 %v286, 1.0
    %v299 = vsub.f32 %v287, 1.0
    %v300 = vsub.f32 %v288, 1.0
    %v301 = vsub.f32 %v289, 1.0
    %v302 = vsub.f32 %v290, 1.0
    %v303 = vsub.f32 %v291, 1.0
    %v304 = vsub.f32 %v292, 1.0
    %v305 = vsub.f32 %v293, 1.0
    %v306 = vsub.f32 %v294, 1.0
    %v307 = vmin.f32 %v295, 30000.0
    %v308 = vmin.f32 %v296, 30000.0
    %v309 = vmin.f32 %v297, 30000.0
    %v310 = vmin.f32 %v298, 30000.0
    %v311 = vmin.f32 %v299, 30000.0
    %v312 = vmin.f32 %v300, 30000.0
    %v313 = vmin.f32 %v301, 30000.0
    %v314 = vmin.f32 %v302, 30000.0
    %v315 = vmin.f32 %v303, 30000.0
    %v316 = vmin.f32 %v304, 30000.0
    %v317 = vmin.f32 %v305, 30000.0
    %v318 = vmin.f32 %v306, 30000.0
    %v319 = vmul.f32 %v307, 24.458334
    %v320 = vmul.f32 %v308, 24.458334
    %v321 = vmul.f32 %v309, 24.458334
    %v322 = vmul.f32 %v310, 24.458334
    %v323 = vmul.f32 %v311, 24.458334
    %v324 = vmul.f32 %v312, 24.458334
    %v325 = vmul.f32 %v313, 24.458334
    %v326 = vmul.f32 %v314, 24.458334
    %v327 = vmul.f32 %v315, 24.458334
    %v328 = vmul.f32 %v316, 24.458334
    %v329 = vmul.f32 %v317, 24.458334
    %v330 = vmul.f32 %v318, 24.458334
    %v331 = vadd.f32 %v319, 1053.0425
    %v332 = vadd.f32 %v320, 1053.0425
    %v333 = vadd.f32 %v321, 1053.0425
    %v334 = vadd.f32 %v322, 1053.0425
    %v335 = vadd.f32 %v323, 1053.0425
    %v336 = vadd.f32 %v324, 1053.0425
    %v337 = vadd.f32 %v325, 1053.0425
    %v338 = vadd.f32 %v326, 1053.0425
    %v339 = vadd.f32 %v327, 1053.0425
    %v340 = vadd.f32 %v328, 1053.0425
    %v341 = vadd.f32 %v329, 1053.0425
    %v342 = vadd.f32 %v330, 1053.0425
    %v343 = vmul.f32 %v331, %v307
    %v344 = vmul.f32 %v332, %v308
    %v345 = vmul.f32 %v333, %v309
    %v346 = vmul.f32 %v334, %v310
    %v347 = vmul.f32 %v335, %v311
    %v348 = vmul.f32 %v336, %v312
    %v349 = vmul.f32 %v337, %v313
    %v350 = vmul.f32 %v338, %v314
    %v351 = vmul.f32 %v339, %v315
    %v352 = vmul.f32 %v340, %v316
    %v353 = vmul.f32 %v341, %v317
    %v354 = vmul.f32 %v342, %v318
    %v355 = vadd.f32 %v343, 19629.51
    %v356 = vadd.f32 %v344, 19629.51
    %v357 = vadd.f32 %v345, 19629.51
    %v358 = vadd.f32 %v346, 19629.51
    %v359 = vadd.f32 %v347, 19629.51
    %v360 = vadd.f32 %v348, 19629.51
    %v361 = vadd.f32 %v349, 19629.51
    %v362 = vadd.f32 %v350, 19629.51
    %v363 = vadd.f32 %v351, 19629.51
    %v364 = vadd.f32 %v352, 19629.51
    %v365 = vadd.f32 %v353, 19629.51
    %v366 = vadd.f32 %v354, 19629.51
    %v367 = vmul.f32 %v355, %v307
    %v368 = vmul.f32 %v356, %v308
    %v369 = vmul.f32 %v357, %v309
    %v370 = vmul.f32 %v358, %v310
    %v371 = vmul.f32 %v359, %v311
    %v372 = vmul.f32 %v360, %v312
    %v373 = vmul.f32 %v361, %v313
    %v374 = vmul.f32 %v362, %v314
    %v375 = vmul.f32 %v363, %v315
    %v376 = vmul.f32 %v364, %v316
    %v377 = vmul.f32 %v365, %v317
    %v378 = vmul.f32 %v366, %v318
    %v379 = vadd.f32 %v367, 205786.22
    %v380 = vadd.f32 %v368, 205786.22
    %v381 = vadd.f32 %v369, 205786.22
    %v382 = vadd.f32 %v370, 205786.22
    %v383 = vadd.f32 %v371, 205786.22
    %v384 = vadd.f32 %v372, 205786.22
    %v385 = vadd.f32 %v373, 205786.22
    %v386 = vadd.f32 %v374, 205786.22
    %v387 = vadd.f32 %v375, 205786.22
    %v388 = vadd.f32 %v376, 205786.22
    %v389 = vadd.f32 %v377, 205786.22
    %v390 = vadd.f32 %v378, 205786.22
    %v391 = vmul.f32 %v379, %v307
    %v392 = vmul.f32 %v380, %v308
    %v393 = vmul.f32 %v381, %v309
    %v394 = vmul.f32 %v382, %v310
    %v395 = vmul.f32 %v383, %v311
    %v396 = vmul.f32 %v384, %v312
    %v397 = vmul.f32 %v385, %v313
    %v398 = vmul.f32 %v386, %v314
    %v399 = vmul.f32 %v387, %v315
    %v400 = vmul.f32 %v388, %v316
    %v401 = vmul.f32 %v389, %v317
    %v402 = vmul.f32 %v390, %v318
    %v403 = vadd.f32 %v391, 1312212.3
    %v404 = vadd.f32 %v392, 1312212.3
    %v405 = vadd.f32 %v393, 1312212.3
    %v406 = vadd.f32 %v394, 1312212.3
    %v407 = vadd.f32 %v395, 1312212.3
    %v408 = vadd.f32 %v396, 1312212.3
    %v409 = vadd.f32 %v397, 1312212.3
    %v410 = vadd.f32 %v398, 1312212.3
    %v411 = vadd.f32 %v399, 1312212.3
    %v412 = vadd.f32 %v400, 1312212.3
    %v413 = vadd.f32 %v401, 1312212.3
    %v414 = vadd.f32 %v402, 1312212.3
    %v415 = vmul.f32 %v403, %v307
    %v416 = vmul.f32 %v404, %v308
    %v417 = vmul.f32 %v405, %v309
    %v418 = vmul.f32 %v406, %v310
    %v419 = vmul.f32 %v407, %v311
    %v420 = vmul.f32 %v408, %v312
    %v421 = vmul.f32 %v409, %v313
    %v422 = vmul.f32 %v410, %v314
    %v423 = vmul.f32 %v411, %v315
    %v424 = vmul.f32 %v412, %v316
    %v425 = vmul.f32 %v413, %v317
    %v426 = vmul.f32 %v414, %v318
    %v427 = vadd.f32 %v415, 5092745.0
    %v428 = vadd.f32 %v416, 5092745.0
    %v429 = vadd.f32 %v417, 5092745.0
    %v430 = vadd.f32 %v418, 5092745.0
    %v431 = vadd.f32 %v419, 5092745.0
    %v432 = vadd.f32 %v420, 5092745.0
    %v433 = vadd.f32 %v421, 5092745.0
    %v434 = vadd.f32 %v422, 5092745.0
    %v435 = vadd.f32 %v423, 5092745.0
    %v436 = vadd.f32 %v424, 5092745.0
    %v437 = vadd.f32 %v425, 5092745.0
    %v438 = vadd.f32 %v426, 5092745.0
    %v439 = vmul.f32 %v427, %v307
    %v440 = vmul.f32 %v428, %v308
    %v441 = vmul.f32 %v429, %v309
    %v442 = vmul.f32 %v430, %v310
    %v443 = vmul.f32 %v431, %v311
    %v444 = vmul.f32 %v432, %v312
    %v445 = vmul.f32 %v433, %v313
    %v446 = vmul.f32 %v434, %v314
    %v447 = vmul.f32 %v435, %v315
    %v448 = vmul.f32 %v436, %v316
    %v449 = vmul.f32 %v437, %v317
    %v450 = vmul.f32 %v438, %v318
    %v451 = vadd.f32 %v439, 11137345.0
    %v452 = vadd.f32 %v440, 11137345.0
    %v453 = vadd.f32 %v441, 11137345.0
    %v454 = vadd.f32 %v442, 11137345.0
    %v455 = vadd.f32 %v443, 11137345.0
    %v456 = vadd.f32 %v444, 11137345.0
    %v457 = vadd.f32 %v445, 11137345.0
    %v458 = vadd.f32 %v446, 11137345.0
    %v459 = vadd.f32 %v447, 11137345.0
    %v460 = vadd.f32 %v448, 11137345.0
    %v461 = vadd.f32 %v449, 11137345.0
    %v462 = vadd.f32 %v450, 11137345.0
    %v463 = vmul.f32 %v451, %v307
    %v464 = vmul.f32 %v452, %v308
    %v465 = vmul.f32 %v453, %v309
    %v466 = vmul.f32 %v454, %v310
    %v467 = vmul.f32 %v455, %v311
    %v468 = vmul.f32 %v456, %v312
    %v469 = vmul.f32 %v457, %v313
    %v470 = vmul.f32 %v458, %v314
    %v471 = vmul.f32 %v459, %v315
    %v472 = vmul.f32 %v460, %v316
    %v473 = vmul.f32 %v461, %v317
    %v474 = vmul.f32 %v462, %v318
    %v475 = vadd.f32 %v463, 10579290.0
    %v476 = vadd.f32 %v464, 10579290.0
    %v477 = vadd.f32 %v465, 10579290.0
    %v478 = vadd.f32 %v466, 10579290.0
    %v479 = vadd.f32 %v467, 10579290.0
    %v480 = vadd.f32 %v468, 10579290.0
    %v481 = vadd.f32 %v469, 10579290.0
    %v482 = vadd.f32 %v470, 10579290.0
    %v483 = vadd.f32 %v471, 10579290.0
    %v484 = vadd.f32 %v472, 10579290.0
    %v485 = vadd.f32 %v473, 10579290.0
    %v486 = vadd.f32 %v474, 10579290.0
    %v487 = vadd.f32 %v307, 36.0
    %v488 = vadd.f32 %v308, 36.0
    %v489 = vadd.f32 %v309, 36.0
    %v490 = vadd.f32 %v310, 36.0
    %v491 = vadd.f32 %v311, 36.0
    %v492 = vadd.f32 %v312, 36.0
    %v493 = vadd.f32 %v313, 36.0
    %v494 = vadd.f32 %v314, 36.0
    %v495 = vadd.f32 %v315, 36.0
    %v496 = vadd.f32 %v316, 36.0
    %v497 = vadd.f32 %v317, 36.0
    %v498 = vadd.f32 %v318, 36.0
    %v499 = vmul.f32 %v487, %v307
    %v500 = vmul.f32 %v488, %v308
    %v501 = vmul.f32 %v489, %v309
    %v502 = vmul.f32 %v490, %v310
    %v503 = vmul.f32 %v491, %v311
    %v504 = vmul.f32 %v492, %v312
    %v505 = vmul.f32 %v493, %v313
    %v506 = vmul.f32 %v494, %v314
    %v507 = vmul.f32 %v495, %v315
    %v508 = vmul.f32 %v496, %v316
    %v509 = vmul.f32 %v497, %v317
    %v510 = vmul.f32 %v498, %v318
    %v511 = vadd.f32 %v499, 546.0
    %v512 = vadd.f32 %v500, 546.0
    %v513 = vadd.f32 %v501, 546.0
    %v514 = vadd.f32 %v502, 546.0
    %v515 = vadd.f32 %v503, 546.0
    %v516 = vadd.f32 %v504, 546.0
    %v517 = vadd.f32 %v505, 546.0
    %v518 = vadd.f32 %v506, 546.0
    %v519 = vadd.f32 %v507, 546.0
    %v520 = vadd.f32 %v508, 546.0
    %v521 = vadd.f32 %v509, 546.0
    %v522 = vadd.f32 %v510, 546.0
    %v523 = vmul.f32 %v511, %v307
    %v524 = vmul.f32 %v512, %v308
    %v525 = vmul.f32 %v513, %v309
    %v526 = vmul.f32 %v514, %v310
    %v527 = vmul.f32 %v515, %v311
    %v528 = vmul.f32 %v516, %v312
    %v529 = vmul.f32 %v517, %v313
    %v530 = vmul.f32 %v518, %v314
    %v531 = vmul.f32 %v519, %v315
    %v532 = vmul.f32 %v520, %v316
    %v533 = vmul.f32 %v521, %v317
    %v534 = vmul.f32 %v522, %v318
    %v535 = vadd.f32 %v523, 4536.0
    %v536 = vadd.f32 %v524, 4536.0
    %v537 = vadd.f32 %v525, 4536.0
    %v538 = vadd.f32 %v526, 4536.0
    %v539 = vadd.f32 %v527, 4536.0
    %v540 = vadd.f32 %v528, 4536.0
    %v541 = vadd.f32 %v529, 4536.0
    %v542 = vadd.f32 %v530, 4536.0
    %v543 = vadd.f32 %v531, 4536.0
    %v544 = vadd.f32 %v532, 4536.0
    %v545 = vadd.f32 %v533, 4536.0
    %v546 = vadd.f32 %v534, 4536.0
    %v547 = vmul.f32 %v535, %v307
    %v548 = vmul.f32 %v536, %v308
    %v549 = vmul.f32 %v537, %v309
    %v550 = vmul.f32 %v538, %v310
    %v551 = vmul.f32 %v539, %v311
    %v552 = vmul.f32 %v540, %v312
    %v553 = vmul.f32 %v541, %v313
    %v554 = vmul.f32 %v542, %v314
    %v555 = vmul.f32 %v543, %v315
    %v556 = vmul.f32 %v544, %v316
    %v557 = vmul.f32 %v545, %v317
    %v558 = vmul.f32 %v546, %v318
    %v559 = vadd.f32 %v547, 22449.0
    %v560 = vadd.f32 %v548, 22449.0
    %v561 = vadd.f32 %v549, 22449.0
    %v562 = vadd.f32 %v550, 22449.0
    %v563 = vadd.f32 %v551, 22449.0
    %v564 = vadd.f32 %v552, 22449.0
    %v565 = vadd.f32 %v553, 22449.0
    %v566 = vadd.f32 %v554, 22449.0
    %v567 = vadd.f32 %v555, 22449.0
    %v568 = vadd.f32 %v556, 22449.0
    %v569 = vadd.f32 %v557, 22449.0
    %v570 = vadd.f32 %v558, 22449.0
    %v571 = vmul.f32 %v559, %v307
    %v572 = vmul.f32 %v560, %v308
    %v573 = vmul.f32 %v561, %v309
    %v574 = vmul.f32 %v562, %v310
    %v575 = vmul.f32 %v563, %v311
    %v576 = vmul.f32 %v564, %v312
    %v577 = vmul.f32 %v565, %v313
    %v578 = vmul.f32 %v566, %v314
    %v579 = vmul.f32 %v567, %v315
    %v580 = vmul.f32 %v568, %v316
    %v581 = vmul.f32 %v569, %v317
    %v582 = vmul.f32 %v570, %v318
    %v583 = vadd.f32 %v571, 67284.0
    %v584 = vadd.f32 %v572, 67284.0
    %v585 = vadd.f32 %v573, 67284.0
    %v586 = vadd.f32 %v574, 67284.0
    %v587 = vadd.f32 %v575, 67284.0
    %v588 = vadd.f32 %v576, 67284.0
    %v589 = vadd.f32 %v577, 67284.0
    %v590 = vadd.f32 %v578, 67284.0
    %v591 = vadd.f32 %v579, 67284.0
    %v592 = vadd.f32 %v580, 67284.0
    %v593 = vadd.f32 %v581, 67284.0
    %v594 = vadd.f32 %v582, 67284.0
    %v595 = vmul.f32 %v583, %v307
    %v596 = vmul.f32 %v584, %v308
    %v597 = vmul.f32 %v585, %v309
    %v598 = vmul.f32 %v586, %v310
    %v599 = vmul.f32 %v587, %v311
    %v600 = vmul.f32 %v588, %v312
    %v601 = vmul.f32 %v589, %v313
    %v602 = vmul.f32 %v590, %v314
    %v603 = vmul.f32 %v591, %v315
    %v604 = vmul.f32 %v592, %v316
    %v605 = vmul.f32 %v593, %v317
    %v606 = vmul.f32 %v594, %v318
    %v607 = vadd.f32 %v595, 118124.0
    %v608 = vadd.f32 %v596, 118124.0
    %v609 = vadd.f32 %v597, 118124.0
    %v610 = vadd.f32 %v598, 118124.0
    %v611 = vadd.f32 %v599, 118124.0
    %v612 = vadd.f32 %v600, 118124.0
    %v613 = vadd.f32 %v601, 118124.0
    %v614 = vadd.f32 %v602, 118124.0
    %v615 = vadd.f32 %v603, 118124.0
    %v616 = vadd.f32 %v604, 118124.0
    %v617 = vadd.f32 %v605, 118124.0
    %v618 = vadd.f32 %v606, 118124.0
    %v619 = vmul.f32 %v607, %v307
    %v620 = vmul.f32 %v608, %v308
    %v621 = vmul.f32 %v609, %v309
    %v622 = vmul.f32 %v610, %v310
    %v623 = vmul.f32 %v611, %v311
    %v624 = vmul.f32 %v612, %v312
    %v625 = vmul.f32 %v613, %v313
    %v626 = vmul.f32 %v614, %v314
    %v627 = vmul.f32 %v615, %v315
    %v628 = vmul.f32 %v616, %v316
    %v629 = vmul.f32 %v617, %v317
    %v630 = vmul.f32 %v618, %v318
    %v631 = vadd.f32 %v619, 109584.0
    %v632 = vadd.f32 %v620, 109584.0
    %v633 = vadd.f32 %v621, 109584.0
    %v634 = vadd.f32 %v622, 109584.0
    %v635 = vadd.f32 %v623, 109584.0
    %v636 = vadd.f32 %v624, 109584.0
    %v637 = vadd.f32 %v625, 109584.0
    %v638 = vadd.f32 %v626, 109584.0
    %v639 = vadd.f32 %v627, 109584.0
    %v640 = vadd.f32 %v628, 109584.0
    %v641 = vadd.f32 %v629, 109584.0
    %v642 = vadd.f32 %v630, 109584.0
    %v643 = vmul.f32 %v631, %v307
    %v644 = vmul.f32 %v632, %v308
    %v645 = vmul.f32 %v633, %v309
    %v646 = vmul.f32 %v634, %v310
    %v647 = vmul.f32 %v635, %v311
    %v648 = vmul.f32 %v636, %v312
    %v649 = vmul.f32 %v637, %v313
    %v650 = vmul.f32 %v638, %v314
    %v651 = vmul.f32 %v639, %v315
    %v652 = vmul.f32 %v640, %v316
    %v653 = vmul.f32 %v641, %v317
    %v654 = vmul.f32 %v642, %v318
    %v655 = vadd.f32 %v643, 40320.0
    %v656 = vadd.f32 %v644, 40320.0
    %v657 = vadd.f32 %v645, 40320.0
    %v658 = vadd.f32 %v646, 40320.0
    %v659 = vadd.f32 %v647, 40320.0
    %v660 = vadd.f32 %v648, 40320.0
    %v661 = vadd.f32 %v649, 40320.0
    %v662 = vadd.f32 %v650, 40320.0
    %v663 = vadd.f32 %v651, 40320.0
    %v664 = vadd.f32 %v652, 40320.0
    %v665 = vadd.f32 %v653, 40320.0
    %v666 = vadd.f32 %v654, 40320.0
    %v667 = vrcp.pop %v655
    %v668 = vrcp.pop %v656
    %v669 = vrcp.pop %v657
    %v670 = vrcp.pop %v658
    %v671 = vrcp.pop %v659
    %v672 = vrcp.pop %v660
    %v673 = vrcp.pop %v661
    %v674 = vrcp.pop %v662
    %v675 = vrcp.pop %v663
    %v676 = vrcp.pop %v664
    %v677 = vrcp.pop %v665
    %v678 = vrcp.pop %v666
    %v679 = vmul.f32 %v655, %v667
    %v680 = vmul.f32 %v656, %v668
    %v681 = vmul.f32 %v657, %v669
    %v682 = vmul.f32 %v658, %v670
    %v683 = vmul.f32 %v659, %v671
    %v684 = vmul.f32 %v660, %v672
    %v685 = vmul.f32 %v661, %v673
    %v686 = vmul.f32 %v662, %v674
    %v687 = vmul.f32 %v663, %v675
    %v688 = vmul.f32 %v664, %v676
    %v689 = vmul.f32 %v665, %v677
    %v690 = vmul.f32 %v666, %v678
    %v691 = vsub.f32 2.0, %v679
    %v692 = vsub.f32 2.0, %v680
    %v693 = vsub.f32 2.0, %v681
    %v694 = vsub.f32 2.0, %v682
    %v695 = vsub.f32 2.0, %v683
    %v696 = vsub.f32 2.0, %v684
    %v697 = vsub.f32 2.0, %v685
    %v698 = vsub.f32 2.0, %v686
    %v699 = vsub.f32 2.0, %v687
    %v700 = vsub.f32 2.0, %v688
    %v701 = vsub.f32 2.0, %v689
    %v702 = vsub.f32 2.0, %v690
    %v703 = vmul.f32 %v667, %v691
    %v704 = vmul.f32 %v668, %v692
    %v705 = vmul.f32 %v669, %v693
    %v706 = vmul.f32 %v670, %v694
    %v707 = vmul.f32 %v671, %v695
    %v708 = vmul.f32 %v672, %v696
    %v709 = vmul.f32 %v673, %v697
    %v710 = vmul.f32 %v674, %v698
    %v711 = vmul.f32 %v675, %v699
    %v712 = vmul.f32 %v676, %v700
    %v713 = vmul.f32 %v677, %v701
    %v714 = vmul.f32 %v678, %v702
    %v715 = vmul.f32 %v475, %v703
    %v716 = vmul.f32 %v476, %v704
    %v717 = vmul.f32 %v477, %v705
    %v718 = vmul.f32 %v478, %v706
    %v719 = vmul.f32 %v479, %v707
    %v720 = vmul.f32 %v480, %v708
    %v721 = vmul.f32 %v481, %v709
    %v722 = vmul.f32 %v482, %v710
    %v723 = vmul.f32 %v483, %v711
    %v724 = vmul.f32 %v484, %v712
    %v725 = vmul.f32 %v485, %v713
    %v726 = vmul.f32 %v486, %v714
    %v727 = vadd.f32 %v715, 1.0
    %v728 = vadd.f32 %v716, 1.0
    %v729 = vadd.f32 %v717, 1.0
    %v730 = vadd.f32 %v718, 1.0
    %v731 = vadd.f32 %v719, 1.0
    %v732 = vadd.f32 %v720, 1.0
    %v733 = vadd.f32 %v721, 1.0
    %v734 = vadd.f32 %v722, 1.0
    %v735 = vadd.f32 %v723, 1.0
    %v736 = vadd.f32 %v724, 1.0
    %v737 = vadd.f32 %v725, 1.0
    %v738 = vadd.f32 %v726, 1.0
    %v739 = vadd.f32 %v283, 6.5
    %v740 = vadd.f32 %v284, 6.5
    %v741 = vadd.f32 %v285, 6.5
    %v742 = vadd.f32 %v286, 6.5
    %v743 = vadd.f32 %v287, 6.5
    %v744 = vadd.f32 %v288, 6.5
    %v745 = vadd.f32 %v289, 6.5
    %v746 = vadd.f32 %v290, 6.5
    %v747 = vadd.f32 %v291, 6.5
    %v748 = vadd.f32 %v292, 6.5
    %v749 = vadd.f32 %v293, 6.5
    %v750 = vadd.f32 %v294, 6.5
    %v751 = vsub.f32 %v283, 0.5
    %v752 = vsub.f32 %v284, 0.5
    %v753 = vsub.f32 %v285, 0.5
    %v754 = vsub.f32 %v286, 0.5
    %v755 = vsub.f32 %v287, 0.5
    %v756 = vsub.f32 %v288, 0.5
    %v757 = vsub.f32 %v289, 0.5
    %v758 = vsub.f32 %v290, 0.5
    %v759 = vsub.f32 %v291, 0.5
    %v760 = vsub.f32 %v292, 0.5
    %v761 = vsub.f32 %v293, 0.5
    %v762 = vsub.f32 %v294, 0.5
    %v763 = vlog2.pop %v739
    %v764 = vmul.f32 %v763, 0.6931472
    %v765 = vlog2.pop %v740
    %v766 = vmul.f32 %v765, 0.6931472
    %v767 = vlog2.pop %v741
    %v768 = vmul.f32 %v767, 0.6931472
    %v769 = vlog2.pop %v742
    %v770 = vmul.f32 %v769, 0.6931472
    %v771 = vlog2.pop %v743
    %v772 = vmul.f32 %v771, 0.6931472
    %v773 = vlog2.pop %v744
    %v774 = vmul.f32 %v773, 0.6931472
    %v775 = vlog2.pop %v745
    %v776 = vmul.f32 %v775, 0.6931472
    %v777 = vlog2.pop %v746
    %v778 = vmul.f32 %v777, 0.6931472
    %v779 = vlog2.pop %v747
    %v780 = vmul.f32 %v779, 0.6931472
    %v781 = vlog2.pop %v748
    %v782 = vmul.f32 %v781, 0.6931472
    %v783 = vlog2.pop %v749
    %v784 = vmul.f32 %v783, 0.6931472
    %v785 = vlog2.pop %v750
    %v786 = vmul.f32 %v785, 0.6931472
    %v787 = vmul.f32 %v751, %v764
    %v788 = vmul.f32 %v752, %v766
    %v789 = vmul.f32 %v753, %v768
    %v790 = vmul.f32 %v754, %v770
    %v791 = vmul.f32 %v755, %v772
    %v792 = vmul.f32 %v756, %v774
    %v793 = vmul.f32 %v757, %v776
    %v794 = vmul.f32 %v758, %v778
    %v795 = vmul.f32 %v759, %v780
    %v796 = vmul.f32 %v760, %v782
    %v797 = vmul.f32 %v761, %v784
    %v798 = vmul.f32 %v762, %v786
    %v799 = vadd.f32 %v787, 0.9189385
    %v800 = vadd.f32 %v788, 0.9189385
    %v801 = vadd.f32 %v789, 0.9189385
    %v802 = vadd.f32 %v790, 0.9189385
    %v803 = vadd.f32 %v791, 0.9189385
    %v804 = vadd.f32 %v792, 0.9189385
    %v805 = vadd.f32 %v793, 0.9189385
    %v806 = vadd.f32 %v794, 0.9189385
    %v807 = vadd.f32 %v795, 0.9189385
    %v808 = vadd.f32 %v796, 0.9189385
    %v809 = vadd.f32 %v797, 0.9189385
    %v810 = vadd.f32 %v798, 0.9189385
    %v811 = vsub.f32 %v799, %v739
    %v812 = vsub.f32 %v800, %v740
    %v813 = vsub.f32 %v801, %v741
    %v814 = vsub.f32 %v802, %v742
    %v815 = vsub.f32 %v803, %v743
    %v816 = vsub.f32 %v804, %v744
    %v817 = vsub.f32 %v805, %v745
    %v818 = vsub.f32 %v806, %v746
    %v819 = vsub.f32 %v807, %v747
    %v820 = vsub.f32 %v808, %v748
    %v821 = vsub.f32 %v809, %v749
    %v822 = vsub.f32 %v810, %v750
    %v823 = vadd.f32 %v115, 1.0
    %v824 = vadd.f32 %v116, 1.0
    %v825 = vadd.f32 %v117, 1.0
    %v826 = vadd.f32 %v118, 1.0
    %v827 = vadd.f32 %v119, 1.0
    %v828 = vadd.f32 %v120, 1.0
    %v829 = vadd.f32 %v121, 1.0
    %v830 = vadd.f32 %v122, 1.0
    %v831 = vadd.f32 %v123, 1.0
    %v832 = vadd.f32 %v124, 1.0
    %v833 = vadd.f32 %v125, 1.0
    %v834 = vadd.f32 %v126, 1.0
    %v835 = vsub.f32 %v823, 1.0
    %v836 = vsub.f32 %v824, 1.0
    %v837 = vsub.f32 %v825, 1.0
    %v838 = vsub.f32 %v826, 1.0
    %v839 = vsub.f32 %v827, 1.0
    %v840 = vsub.f32 %v828, 1.0
    %v841 = vsub.f32 %v829, 1.0
    %v842 = vsub.f32 %v830, 1.0
    %v843 = vsub.f32 %v831, 1.0
    %v844 = vsub.f32 %v832, 1.0
    %v845 = vsub.f32 %v833, 1.0
    %v846 = vsub.f32 %v834, 1.0
    %v847 = vmin.f32 %v835, 30000.0
    %v848 = vmin.f32 %v836, 30000.0
    %v849 = vmin.f32 %v837, 30000.0
    %v850 = vmin.f32 %v838, 30000.0
    %v851 = vmin.f32 %v839, 30000.0
    %v852 = vmin.f32 %v840, 30000.0
    %v853 = vmin.f32 %v841, 30000.0
    %v854 = vmin.f32 %v842, 30000.0
    %v855 = vmin.f32 %v843, 30000.0
    %v856 = vmin.f32 %v844, 30000.0
    %v857 = vmin.f32 %v845, 30000.0
    %v858 = vmin.f32 %v846, 30000.0
    %v859 = vmul.f32 %v847, 24.458334
    %v860 = vmul.f32 %v848, 24.458334
    %v861 = vmul.f32 %v849, 24.458334
    %v862 = vmul.f32 %v850, 24.458334
    %v863 = vmul.f32 %v851, 24.458334
    %v864 = vmul.f32 %v852, 24.458334
    %v865 = vmul.f32 %v853, 24.458334
    %v866 = vmul.f32 %v854, 24.458334
    %v867 = vmul.f32 %v855, 24.458334
    %v868 = vmul.f32 %v856, 24.458334
    %v869 = vmul.f32 %v857, 24.458334
    %v870 = vmul.f32 %v858, 24.458334
    %v871 = vadd.f32 %v859, 1053.0425
    %v872 = vadd.f32 %v860, 1053.0425
    %v873 = vadd.f32 %v861, 1053.0425
    %v874 = vadd.f32 %v862, 1053.0425
    %v875 = vadd.f32 %v863, 1053.0425
    %v876 = vadd.f32 %v864, 1053.0425
    %v877 = vadd.f32 %v865, 1053.0425
    %v878 = vadd.f32 %v866, 1053.0425
    %v879 = vadd.f32 %v867, 1053.0425
    %v880 = vadd.f32 %v868, 1053.0425
    %v881 = vadd.f32 %v869, 1053.0425
    %v882 = vadd.f32 %v870, 1053.0425
    %v883 = vmul.f32 %v871, %v847
    %v884 = vmul.f32 %v872, %v848
    %v885 = vmul.f32 %v873, %v849
    %v886 = vmul.f32 %v874, %v850
    %v887 = vmul.f32 %v875, %v851
    %v888 = vmul.f32 %v876, %v852
    %v889 = vmul.f32 %v877, %v853
    %v890 = vmul.f32 %v878, %v854
    %v891 = vmul.f32 %v879, %v855
    %v892 = vmul.f32 %v880, %v856
    %v893 = vmul.f32 %v881, %v857
    %v894 = vmul.f32 %v882, %v858
    %v895 = vadd.f32 %v883, 19629.51
    %v896 = vadd.f32 %v884, 19629.51
    %v897 = vadd.f32 %v885, 19629.51
    %v898 = vadd.f32 %v886, 19629.51
    %v899 = vadd.f32 %v887, 19629.51
    %v900 = vadd.f32 %v888, 19629.51
    %v901 = vadd.f32 %v889, 19629.51
    %v902 = vadd.f32 %v890, 19629.51
    %v903 = vadd.f32 %v891, 19629.51
    %v904 = vadd.f32 %v892, 19629.51
    %v905 = vadd.f32 %v893, 19629.51
    %v906 = vadd.f32 %v894, 19629.51
    %v907 = vmul.f32 %v895, %v847
    %v908 = vmul.f32 %v896, %v848
    %v909 = vmul.f32 %v897, %v849
    %v910 = vmul.f32 %v898, %v850
    %v911 = vmul.f32 %v899, %v851
    %v912 = vmul.f32 %v900, %v852
    %v913 = vmul.f32 %v901, %v853
    %v914 = vmul.f32 %v902, %v854
    %v915 = vmul.f32 %v903, %v855
    %v916 = vmul.f32 %v904, %v856
    %v917 = vmul.f32 %v905, %v857
    %v918 = vmul.f32 %v906, %v858
    %v919 = vadd.f32 %v907, 205786.22
    %v920 = vadd.f32 %v908, 205786.22
    %v921 = vadd.f32 %v909, 205786.22
    %v922 = vadd.f32 %v910, 205786.22
    %v923 = vadd.f32 %v911, 205786.22
    %v924 = vadd.f32 %v912, 205786.22
    %v925 = vadd.f32 %v913, 205786.22
    %v926 = vadd.f32 %v914, 205786.22
    %v927 = vadd.f32 %v915, 205786.22
    %v928 = vadd.f32 %v916, 205786.22
    %v929 = vadd.f32 %v917, 205786.22
    %v930 = vadd.f32 %v918, 205786.22
    %v931 = vmul.f32 %v919, %v847
    %v932 = vmul.f32 %v920, %v848
    %v933 = vmul.f32 %v921, %v849
    %v934 = vmul.f32 %v922, %v850
    %v935 = vmul.f32 %v923, %v851
    %v936 = vmul.f32 %v924, %v852
    %v937 = vmul.f32 %v925, %v853
    %v938 = vmul.f32 %v926, %v854
    %v939 = vmul.f32 %v927, %v855
    %v940 = vmul.f32 %v928, %v856
    %v941 = vmul.f32 %v929, %v857
    %v942 = vmul.f32 %v930, %v858
    %v943 = vadd.f32 %v931, 1312212.3
    %v944 = vadd.f32 %v932, 1312212.3
    %v945 = vadd.f32 %v933, 1312212.3
    %v946 = vadd.f32 %v934, 1312212.3
    %v947 = vadd.f32 %v935, 1312212.3
    %v948 = vadd.f32 %v936, 1312212.3
    %v949 = vadd.f32 %v937, 1312212.3
    %v950 = vadd.f32 %v938, 1312212.3
    %v951 = vadd.f32 %v939, 1312212.3
    %v952 = vadd.f32 %v940, 1312212.3
    %v953 = vadd.f32 %v941, 1312212.3
    %v954 = vadd.f32 %v942, 1312212.3
    %v955 = vmul.f32 %v943, %v847
    %v956 = vmul.f32 %v944, %v848
    %v957 = vmul.f32 %v945, %v849
    %v958 = vmul.f32 %v946, %v850
    %v959 = vmul.f32 %v947, %v851
    %v960 = vmul.f32 %v948, %v852
    %v961 = vmul.f32 %v949, %v853
    %v962 = vmul.f32 %v950, %v854
    %v963 = vmul.f32 %v951, %v855
    %v964 = vmul.f32 %v952, %v856
    %v965 = vmul.f32 %v953, %v857
    %v966 = vmul.f32 %v954, %v858
    %v967 = vadd.f32 %v955, 5092745.0
    %v968 = vadd.f32 %v956, 5092745.0
    %v969 = vadd.f32 %v957, 5092745.0
    %v970 = vadd.f32 %v958, 5092745.0
    %v971 = vadd.f32 %v959, 5092745.0
    %v972 = vadd.f32 %v960, 5092745.0
    %v973 = vadd.f32 %v961, 5092745.0
    %v974 = vadd.f32 %v962, 5092745.0
    %v975 = vadd.f32 %v963, 5092745.0
    %v976 = vadd.f32 %v964, 5092745.0
    %v977 = vadd.f32 %v965, 5092745.0
    %v978 = vadd.f32 %v966, 5092745.0
    %v979 = vmul.f32 %v967, %v847
    %v980 = vmul.f32 %v968, %v848
    %v981 = vmul.f32 %v969, %v849
    %v982 = vmul.f32 %v970, %v850
    %v983 = vmul.f32 %v971, %v851
    %v984 = vmul.f32 %v972, %v852
    %v985 = vmul.f32 %v973, %v853
    %v986 = vmul.f32 %v974, %v854
    %v987 = vmul.f32 %v975, %v855
    %v988 = vmul.f32 %v976, %v856
    %v989 = vmul.f32 %v977, %v857
    %v990 = vmul.f32 %v978, %v858
    %v991 = vadd.f32 %v979, 11137345.0
    %v992 = vadd.f32 %v980, 11137345.0
    %v993 = vadd.f32 %v981, 11137345.0
    %v994 = vadd.f32 %v982, 11137345.0
    %v995 = vadd.f32 %v983, 11137345.0
    %v996 = vadd.f32 %v984, 11137345.0
    %v997 = vadd.f32 %v985, 11137345.0
    %v998 = vadd.f32 %v986, 11137345.0
    %v999 = vadd.f32 %v987, 11137345.0
    %v1000 = vadd.f32 %v988, 11137345.0
    %v1001 = vadd.f32 %v989, 11137345.0
    %v1002 = vadd.f32 %v990, 11137345.0
    %v1003 = vmul.f32 %v991, %v847
    %v1004 = vmul.f32 %v992, %v848
    %v1005 = vmul.f32 %v993, %v849
    %v1006 = vmul.f32 %v994, %v850
    %v1007 = vmul.f32 %v995, %v851
    %v1008 = vmul.f32 %v996, %v852
    %v1009 = vmul.f32 %v997, %v853
    %v1010 = vmul.f32 %v998, %v854
    %v1011 = vmul.f32 %v999, %v855
    %v1012 = vmul.f32 %v1000, %v856
    %v1013 = vmul.f32 %v1001, %v857
    %v1014 = vmul.f32 %v1002, %v858
    %v1015 = vadd.f32 %v1003, 10579290.0
    %v1016 = vadd.f32 %v1004, 10579290.0
    %v1017 = vadd.f32 %v1005, 10579290.0
    %v1018 = vadd.f32 %v1006, 10579290.0
    %v1019 = vadd.f32 %v1007, 10579290.0
    %v1020 = vadd.f32 %v1008, 10579290.0
    %v1021 = vadd.f32 %v1009, 10579290.0
    %v1022 = vadd.f32 %v1010, 10579290.0
    %v1023 = vadd.f32 %v1011, 10579290.0
    %v1024 = vadd.f32 %v1012, 10579290.0
    %v1025 = vadd.f32 %v1013, 10579290.0
    %v1026 = vadd.f32 %v1014, 10579290.0
    %v1027 = vadd.f32 %v847, 36.0
    %v1028 = vadd.f32 %v848, 36.0
    %v1029 = vadd.f32 %v849, 36.0
    %v1030 = vadd.f32 %v850, 36.0
    %v1031 = vadd.f32 %v851, 36.0
    %v1032 = vadd.f32 %v852, 36.0
    %v1033 = vadd.f32 %v853, 36.0
    %v1034 = vadd.f32 %v854, 36.0
    %v1035 = vadd.f32 %v855, 36.0
    %v1036 = vadd.f32 %v856, 36.0
    %v1037 = vadd.f32 %v857, 36.0
    %v1038 = vadd.f32 %v858, 36.0
    %v1039 = vmul.f32 %v1027, %v847
    %v1040 = vmul.f32 %v1028, %v848
    %v1041 = vmul.f32 %v1029, %v849
    %v1042 = vmul.f32 %v1030, %v850
    %v1043 = vmul.f32 %v1031, %v851
    %v1044 = vmul.f32 %v1032, %v852
    %v1045 = vmul.f32 %v1033, %v853
    %v1046 = vmul.f32 %v1034, %v854
    %v1047 = vmul.f32 %v1035, %v855
    %v1048 = vmul.f32 %v1036, %v856
    %v1049 = vmul.f32 %v1037, %v857
    %v1050 = vmul.f32 %v1038, %v858
    %v1051 = vadd.f32 %v1039, 546.0
    %v1052 = vadd.f32 %v1040, 546.0
    %v1053 = vadd.f32 %v1041, 546.0
    %v1054 = vadd.f32 %v1042, 546.0
    %v1055 = vadd.f32 %v1043, 546.0
    %v1056 = vadd.f32 %v1044, 546.0
    %v1057 = vadd.f32 %v1045, 546.0
    %v1058 = vadd.f32 %v1046, 546.0
    %v1059 = vadd.f32 %v1047, 546.0
    %v1060 = vadd.f32 %v1048, 546.0
    %v1061 = vadd.f32 %v1049, 546.0
    %v1062 = vadd.f32 %v1050, 546.0
    %v1063 = vmul.f32 %v1051, %v847
    %v1064 = vmul.f32 %v1052, %v848
    %v1065 = vmul.f32 %v1053, %v849
    %v1066 = vmul.f32 %v1054, %v850
    %v1067 = vmul.f32 %v1055, %v851
    %v1068 = vmul.f32 %v1056, %v852
    %v1069 = vmul.f32 %v1057, %v853
    %v1070 = vmul.f32 %v1058, %v854
    %v1071 = vmul.f32 %v1059, %v855
    %v1072 = vmul.f32 %v1060, %v856
    %v1073 = vmul.f32 %v1061, %v857
    %v1074 = vmul.f32 %v1062, %v858
    %v1075 = vadd.f32 %v1063, 4536.0
    %v1076 = vadd.f32 %v1064, 4536.0
    %v1077 = vadd.f32 %v1065, 4536.0
    %v1078 = vadd.f32 %v1066, 4536.0
    %v1079 = vadd.f32 %v1067, 4536.0
    %v1080 = vadd.f32 %v1068, 4536.0
    %v1081 = vadd.f32 %v1069, 4536.0
    %v1082 = vadd.f32 %v1070, 4536.0
    %v1083 = vadd.f32 %v1071, 4536.0
    %v1084 = vadd.f32 %v1072, 4536.0
    %v1085 = vadd.f32 %v1073, 4536.0
    %v1086 = vadd.f32 %v1074, 4536.0
    %v1087 = vmul.f32 %v1075, %v847
    %v1088 = vmul.f32 %v1076, %v848
    %v1089 = vmul.f32 %v1077, %v849
    %v1090 = vmul.f32 %v1078, %v850
    %v1091 = vmul.f32 %v1079, %v851
    %v1092 = vmul.f32 %v1080, %v852
    %v1093 = vmul.f32 %v1081, %v853
    %v1094 = vmul.f32 %v1082, %v854
    %v1095 = vmul.f32 %v1083, %v855
    %v1096 = vmul.f32 %v1084, %v856
    %v1097 = vmul.f32 %v1085, %v857
    %v1098 = vmul.f32 %v1086, %v858
    %v1099 = vadd.f32 %v1087, 22449.0
    %v1100 = vadd.f32 %v1088, 22449.0
    %v1101 = vadd.f32 %v1089, 22449.0
    %v1102 = vadd.f32 %v1090, 22449.0
    %v1103 = vadd.f32 %v1091, 22449.0
    %v1104 = vadd.f32 %v1092, 22449.0
    %v1105 = vadd.f32 %v1093, 22449.0
    %v1106 = vadd.f32 %v1094, 22449.0
    %v1107 = vadd.f32 %v1095, 22449.0
    %v1108 = vadd.f32 %v1096, 22449.0
    %v1109 = vadd.f32 %v1097, 22449.0
    %v1110 = vadd.f32 %v1098, 22449.0
    %v1111 = vmul.f32 %v1099, %v847
    %v1112 = vmul.f32 %v1100, %v848
    %v1113 = vmul.f32 %v1101, %v849
    %v1114 = vmul.f32 %v1102, %v850
    %v1115 = vmul.f32 %v1103, %v851
    %v1116 = vmul.f32 %v1104, %v852
    %v1117 = vmul.f32 %v1105, %v853
    %v1118 = vmul.f32 %v1106, %v854
    %v1119 = vmul.f32 %v1107, %v855
    %v1120 = vmul.f32 %v1108, %v856
    %v1121 = vmul.f32 %v1109, %v857
    %v1122 = vmul.f32 %v1110, %v858
    %v1123 = vadd.f32 %v1111, 67284.0
    %v1124 = vadd.f32 %v1112, 67284.0
    %v1125 = vadd.f32 %v1113, 67284.0
    %v1126 = vadd.f32 %v1114, 67284.0
    %v1127 = vadd.f32 %v1115, 67284.0
    %v1128 = vadd.f32 %v1116, 67284.0
    %v1129 = vadd.f32 %v1117, 67284.0
    %v1130 = vadd.f32 %v1118, 67284.0
    %v1131 = vadd.f32 %v1119, 67284.0
    %v1132 = vadd.f32 %v1120, 67284.0
    %v1133 = vadd.f32 %v1121, 67284.0
    %v1134 = vadd.f32 %v1122, 67284.0
    %v1135 = vmul.f32 %v1123, %v847
    %v1136 = vmul.f32 %v1124, %v848
    %v1137 = vmul.f32 %v1125, %v849
    %v1138 = vmul.f32 %v1126, %v850
    %v1139 = vmul.f32 %v1127, %v851
    %v1140 = vmul.f32 %v1128, %v852
    %v1141 = vmul.f32 %v1129, %v853
    %v1142 = vmul.f32 %v1130, %v854
    %v1143 = vmul.f32 %v1131, %v855
    %v1144 = vmul.f32 %v1132, %v856
    %v1145 = vmul.f32 %v1133, %v857
    %v1146 = vmul.f32 %v1134, %v858
    %v1147 = vadd.f32 %v1135, 118124.0
    %v1148 = vadd.f32 %v1136, 118124.0
    %v1149 = vadd.f32 %v1137, 118124.0
    %v1150 = vadd.f32 %v1138, 118124.0
    %v1151 = vadd.f32 %v1139, 118124.0
    %v1152 = vadd.f32 %v1140, 118124.0
    %v1153 = vadd.f32 %v1141, 118124.0
    %v1154 = vadd.f32 %v1142, 118124.0
    %v1155 = vadd.f32 %v1143, 118124.0
    %v1156 = vadd.f32 %v1144, 118124.0
    %v1157 = vadd.f32 %v1145, 118124.0
    %v1158 = vadd.f32 %v1146, 118124.0
    %v1159 = vmul.f32 %v1147, %v847
    %v1160 = vmul.f32 %v1148, %v848
    %v1161 = vmul.f32 %v1149, %v849
    %v1162 = vmul.f32 %v1150, %v850
    %v1163 = vmul.f32 %v1151, %v851
    %v1164 = vmul.f32 %v1152, %v852
    %v1165 = vmul.f32 %v1153, %v853
    %v1166 = vmul.f32 %v1154, %v854
    %v1167 = vmul.f32 %v1155, %v855
    %v1168 = vmul.f32 %v1156, %v856
    %v1169 = vmul.f32 %v1157, %v857
    %v1170 = vmul.f32 %v1158, %v858
    %v1171 = vadd.f32 %v1159, 109584.0
    %v1172 = vadd.f32 %v1160, 109584.0
    %v1173 = vadd.f32 %v1161, 109584.0
    %v1174 = vadd.f32 %v1162, 109584.0
    %v1175 = vadd.f32 %v1163, 109584.0
    %v1176 = vadd.f32 %v1164, 109584.0
    %v1177 = vadd.f32 %v1165, 109584.0
    %v1178 = vadd.f32 %v1166, 109584.0
    %v1179 = vadd.f32 %v1167, 109584.0
    %v1180 = vadd.f32 %v1168, 109584.0
    %v1181 = vadd.f32 %v1169, 109584.0
    %v1182 = vadd.f32 %v1170, 109584.0
    %v1183 = vmul.f32 %v1171, %v847
    %v1184 = vmul.f32 %v1172, %v848
    %v1185 = vmul.f32 %v1173, %v849
    %v1186 = vmul.f32 %v1174, %v850
    %v1187 = vmul.f32 %v1175, %v851
    %v1188 = vmul.f32 %v1176, %v852
    %v1189 = vmul.f32 %v1177, %v853
    %v1190 = vmul.f32 %v1178, %v854
    %v1191 = vmul.f32 %v1179, %v855
    %v1192 = vmul.f32 %v1180, %v856
    %v1193 = vmul.f32 %v1181, %v857
    %v1194 = vmul.f32 %v1182, %v858
    %v1195 = vadd.f32 %v1183, 40320.0
    %v1196 = vadd.f32 %v1184, 40320.0
    %v1197 = vadd.f32 %v1185, 40320.0
    %v1198 = vadd.f32 %v1186, 40320.0
    %v1199 = vadd.f32 %v1187, 40320.0
    %v1200 = vadd.f32 %v1188, 40320.0
    %v1201 = vadd.f32 %v1189, 40320.0
    %v1202 = vadd.f32 %v1190, 40320.0
    %v1203 = vadd.f32 %v1191, 40320.0
    %v1204 = vadd.f32 %v1192, 40320.0
    %v1205 = vadd.f32 %v1193, 40320.0
    %v1206 = vadd.f32 %v1194, 40320.0
    %v1207 = vrcp.pop %v1195
    %v1208 = vrcp.pop %v1196
    %v1209 = vrcp.pop %v1197
    %v1210 = vrcp.pop %v1198
    %v1211 = vrcp.pop %v1199
    %v1212 = vrcp.pop %v1200
    %v1213 = vrcp.pop %v1201
    %v1214 = vrcp.pop %v1202
    %v1215 = vrcp.pop %v1203
    %v1216 = vrcp.pop %v1204
    %v1217 = vrcp.pop %v1205
    %v1218 = vrcp.pop %v1206
    %v1219 = vmul.f32 %v1195, %v1207
    %v1220 = vmul.f32 %v1196, %v1208
    %v1221 = vmul.f32 %v1197, %v1209
    %v1222 = vmul.f32 %v1198, %v1210
    %v1223 = vmul.f32 %v1199, %v1211
    %v1224 = vmul.f32 %v1200, %v1212
    %v1225 = vmul.f32 %v1201, %v1213
    %v1226 = vmul.f32 %v1202, %v1214
    %v1227 = vmul.f32 %v1203, %v1215
    %v1228 = vmul.f32 %v1204, %v1216
    %v1229 = vmul.f32 %v1205, %v1217
    %v1230 = vmul.f32 %v1206, %v1218
    %v1231 = vsub.f32 2.0, %v1219
    %v1232 = vsub.f32 2.0, %v1220
    %v1233 = vsub.f32 2.0, %v1221
    %v1234 = vsub.f32 2.0, %v1222
    %v1235 = vsub.f32 2.0, %v1223
    %v1236 = vsub.f32 2.0, %v1224
    %v1237 = vsub.f32 2.0, %v1225
    %v1238 = vsub.f32 2.0, %v1226
    %v1239 = vsub.f32 2.0, %v1227
    %v1240 = vsub.f32 2.0, %v1228
    %v1241 = vsub.f32 2.0, %v1229
    %v1242 = vsub.f32 2.0, %v1230
    %v1243 = vmul.f32 %v1207, %v1231
    %v1244 = vmul.f32 %v1208, %v1232
    %v1245 = vmul.f32 %v1209, %v1233
    %v1246 = vmul.f32 %v1210, %v1234
    %v1247 = vmul.f32 %v1211, %v1235
    %v1248 = vmul.f32 %v1212, %v1236
    %v1249 = vmul.f32 %v1213, %v1237
    %v1250 = vmul.f32 %v1214, %v1238
    %v1251 = vmul.f32 %v1215, %v1239
    %v1252 = vmul.f32 %v1216, %v1240
    %v1253 = vmul.f32 %v1217, %v1241
    %v1254 = vmul.f32 %v1218, %v1242
    %v1255 = vmul.f32 %v1015, %v1243
    %v1256 = vmul.f32 %v1016, %v1244
    %v1257 = vmul.f32 %v1017, %v1245
    %v1258 = vmul.f32 %v1018, %v1246
    %v1259 = vmul.f32 %v1019, %v1247
    %v1260 = vmul.f32 %v1020, %v1248
    %v1261 = vmul.f32 %v1021, %v1249
    %v1262 = vmul.f32 %v1022, %v1250
    %v1263 = vmul.f32 %v1023, %v1251
    %v1264 = vmul.f32 %v1024, %v1252
    %v1265 = vmul.f32 %v1025, %v1253
    %v1266 = vmul.f32 %v1026, %v1254
    %v1267 = vadd.f32 %v1255, 1.0
    %v1268 = vadd.f32 %v1256, 1.0
    %v1269 = vadd.f32 %v1257, 1.0
    %v1270 = vadd.f32 %v1258, 1.0
    %v1271 = vadd.f32 %v1259, 1.0
    %v1272 = vadd.f32 %v1260, 1.0
    %v1273 = vadd.f32 %v1261, 1.0
    %v1274 = vadd.f32 %v1262, 1.0
    %v1275 = vadd.f32 %v1263, 1.0
    %v1276 = vadd.f32 %v1264, 1.0
    %v1277 = vadd.f32 %v1265, 1.0
    %v1278 = vadd.f32 %v1266, 1.0
    %v1279 = vadd.f32 %v823, 6.5
    %v1280 = vadd.f32 %v824, 6.5
    %v1281 = vadd.f32 %v825, 6.5
    %v1282 = vadd.f32 %v826, 6.5
    %v1283 = vadd.f32 %v827, 6.5
    %v1284 = vadd.f32 %v828, 6.5
    %v1285 = vadd.f32 %v829, 6.5
    %v1286 = vadd.f32 %v830, 6.5
    %v1287 = vadd.f32 %v831, 6.5
    %v1288 = vadd.f32 %v832, 6.5
    %v1289 = vadd.f32 %v833, 6.5
    %v1290 = vadd.f32 %v834, 6.5
    %v1291 = vsub.f32 %v823, 0.5
    %v1292 = vsub.f32 %v824, 0.5
    %v1293 = vsub.f32 %v825, 0.5
    %v1294 = vsub.f32 %v826, 0.5
    %v1295 = vsub.f32 %v827, 0.5
    %v1296 = vsub.f32 %v828, 0.5
    %v1297 = vsub.f32 %v829, 0.5
    %v1298 = vsub.f32 %v830, 0.5
    %v1299 = vsub.f32 %v831, 0.5
    %v1300 = vsub.f32 %v832, 0.5
    %v1301 = vsub.f32 %v833, 0.5
    %v1302 = vsub.f32 %v834, 0.5
    %v1303 = vlog2.pop %v1279
    %v1304 = vmul.f32 %v1303, 0.6931472
    %v1305 = vlog2.pop %v1280
    %v1306 = vmul.f32 %v1305, 0.6931472
    %v1307 = vlog2.pop %v1281
    %v1308 = vmul.f32 %v1307, 0.6931472
    %v1309 = vlog2.pop %v1282
    %v1310 = vmul.f32 %v1309, 0.6931472
    %v1311 = vlog2.pop %v1283
    %v1312 = vmul.f32 %v1311, 0.6931472
    %v1313 = vlog2.pop %v1284
    %v1314 = vmul.f32 %v1313, 0.6931472
    %v1315 = vlog2.pop %v1285
    %v1316 = vmul.f32 %v1315, 0.6931472
    %v1317 = vlog2.pop %v1286
    %v1318 = vmul.f32 %v1317, 0.6931472
    %v1319 = vlog2.pop %v1287
    %v1320 = vmul.f32 %v1319, 0.6931472
    %v1321 = vlog2.pop %v1288
    %v1322 = vmul.f32 %v1321, 0.6931472
    %v1323 = vlog2.pop %v1289
    %v1324 = vmul.f32 %v1323, 0.6931472
    %v1325 = vlog2.pop %v1290
    %v1326 = vmul.f32 %v1325, 0.6931472
    %v1327 = vmul.f32 %v1291, %v1304
    %v1328 = vmul.f32 %v1292, %v1306
    %v1329 = vmul.f32 %v1293, %v1308
    %v1330 = vmul.f32 %v1294, %v1310
    %v1331 = vmul.f32 %v1295, %v1312
    %v1332 = vmul.f32 %v1296, %v1314
    %v1333 = vmul.f32 %v1297, %v1316
    %v1334 = vmul.f32 %v1298, %v1318
    %v1335 = vmul.f32 %v1299, %v1320
    %v1336 = vmul.f32 %v1300, %v1322
    %v1337 = vmul.f32 %v1301, %v1324
    %v1338 = vmul.f32 %v1302, %v1326
    %v1339 = vadd.f32 %v1327, 0.9189385
    %v1340 = vadd.f32 %v1328, 0.9189385
    %v1341 = vadd.f32 %v1329, 0.9189385
    %v1342 = vadd.f32 %v1330, 0.9189385
    %v1343 = vadd.f32 %v1331, 0.9189385
    %v1344 = vadd.f32 %v1332, 0.9189385
    %v1345 = vadd.f32 %v1333, 0.9189385
    %v1346 = vadd.f32 %v1334, 0.9189385
    %v1347 = vadd.f32 %v1335, 0.9189385
    %v1348 = vadd.f32 %v1336, 0.9189385
    %v1349 = vadd.f32 %v1337, 0.9189385
    %v1350 = vadd.f32 %v1338, 0.9189385
    %v1351 = vsub.f32 %v1339, %v1279
    %v1352 = vsub.f32 %v1340, %v1280
    %v1353 = vsub.f32 %v1341, %v1281
    %v1354 = vsub.f32 %v1342, %v1282
    %v1355 = vsub.f32 %v1343, %v1283
    %v1356 = vsub.f32 %v1344, %v1284
    %v1357 = vsub.f32 %v1345, %v1285
    %v1358 = vsub.f32 %v1346, %v1286
    %v1359 = vsub.f32 %v1347, %v1287
    %v1360 = vsub.f32 %v1348, %v1288
    %v1361 = vsub.f32 %v1349, %v1289
    %v1362 = vsub.f32 %v1350, %v1290
    %v1363 = vadd.f32 %v115, %v127
    %v1364 = vadd.f32 %v116, %v128
    %v1365 = vadd.f32 %v117, %v129
    %v1366 = vadd.f32 %v118, %v130
    %v1367 = vadd.f32 %v119, %v131
    %v1368 = vadd.f32 %v120, %v132
    %v1369 = vadd.f32 %v121, %v133
    %v1370 = vadd.f32 %v122, %v134
    %v1371 = vadd.f32 %v123, %v135
    %v1372 = vadd.f32 %v124, %v136
    %v1373 = vadd.f32 %v125, %v137
    %v1374 = vadd.f32 %v126, %v138
    %v1375 = vadd.f32 %v1363, 1e-10
    %v1376 = vadd.f32 %v1364, 1e-10
    %v1377 = vadd.f32 %v1365, 1e-10
    %v1378 = vadd.f32 %v1366, 1e-10
    %v1379 = vadd.f32 %v1367, 1e-10
    %v1380 = vadd.f32 %v1368, 1e-10
    %v1381 = vadd.f32 %v1369, 1e-10
    %v1382 = vadd.f32 %v1370, 1e-10
    %v1383 = vadd.f32 %v1371, 1e-10
    %v1384 = vadd.f32 %v1372, 1e-10
    %v1385 = vadd.f32 %v1373, 1e-10
    %v1386 = vadd.f32 %v1374, 1e-10
    %v1387 = vsub.f32 %v1375, 1.0
    %v1388 = vsub.f32 %v1376, 1.0
    %v1389 = vsub.f32 %v1377, 1.0
    %v1390 = vsub.f32 %v1378, 1.0
    %v1391 = vsub.f32 %v1379, 1.0
    %v1392 = vsub.f32 %v1380, 1.0
    %v1393 = vsub.f32 %v1381, 1.0
    %v1394 = vsub.f32 %v1382, 1.0
    %v1395 = vsub.f32 %v1383, 1.0
    %v1396 = vsub.f32 %v1384, 1.0
    %v1397 = vsub.f32 %v1385, 1.0
    %v1398 = vsub.f32 %v1386, 1.0
    %v1399 = vmin.f32 %v1387, 30000.0
    %v1400 = vmin.f32 %v1388, 30000.0
    %v1401 = vmin.f32 %v1389, 30000.0
    %v1402 = vmin.f32 %v1390, 30000.0
    %v1403 = vmin.f32 %v1391, 30000.0
    %v1404 = vmin.f32 %v1392, 30000.0
    %v1405 = vmin.f32 %v1393, 30000.0
    %v1406 = vmin.f32 %v1394, 30000.0
    %v1407 = vmin.f32 %v1395, 30000.0
    %v1408 = vmin.f32 %v1396, 30000.0
    %v1409 = vmin.f32 %v1397, 30000.0
    %v1410 = vmin.f32 %v1398, 30000.0
    %v1411 = vmul.f32 %v1399, 24.458334
    %v1412 = vmul.f32 %v1400, 24.458334
    %v1413 = vmul.f32 %v1401, 24.458334
    %v1414 = vmul.f32 %v1402, 24.458334
    %v1415 = vmul.f32 %v1403, 24.458334
    %v1416 = vmul.f32 %v1404, 24.458334
    %v1417 = vmul.f32 %v1405, 24.458334
    %v1418 = vmul.f32 %v1406, 24.458334
    %v1419 = vmul.f32 %v1407, 24.458334
    %v1420 = vmul.f32 %v1408, 24.458334
    %v1421 = vmul.f32 %v1409, 24.458334
    %v1422 = vmul.f32 %v1410, 24.458334
    %v1423 = vadd.f32 %v1411, 1053.0425
    %v1424 = vadd.f32 %v1412, 1053.0425
    %v1425 = vadd.f32 %v1413, 1053.0425
    %v1426 = vadd.f32 %v1414, 1053.0425
    %v1427 = vadd.f32 %v1415, 1053.0425
    %v1428 = vadd.f32 %v1416, 1053.0425
    %v1429 = vadd.f32 %v1417, 1053.0425
    %v1430 = vadd.f32 %v1418, 1053.0425
    %v1431 = vadd.f32 %v1419, 1053.0425
    %v1432 = vadd.f32 %v1420, 1053.0425
    %v1433 = vadd.f32 %v1421, 1053.0425
    %v1434 = vadd.f32 %v1422, 1053.0425
    %v1435 = vmul.f32 %v1423, %v1399
    %v1436 = vmul.f32 %v1424, %v1400
    %v1437 = vmul.f32 %v1425, %v1401
    %v1438 = vmul.f32 %v1426, %v1402
    %v1439 = vmul.f32 %v1427, %v1403
    %v1440 = vmul.f32 %v1428, %v1404
    %v1441 = vmul.f32 %v1429, %v1405
    %v1442 = vmul.f32 %v1430, %v1406
    %v1443 = vmul.f32 %v1431, %v1407
    %v1444 = vmul.f32 %v1432, %v1408
    %v1445 = vmul.f32 %v1433, %v1409
    %v1446 = vmul.f32 %v1434, %v1410
    %v1447 = vadd.f32 %v1435, 19629.51
    %v1448 = vadd.f32 %v1436, 19629.51
    %v1449 = vadd.f32 %v1437, 19629.51
    %v1450 = vadd.f32 %v1438, 19629.51
    %v1451 = vadd.f32 %v1439, 19629.51
    %v1452 = vadd.f32 %v1440, 19629.51
    %v1453 = vadd.f32 %v1441, 19629.51
    %v1454 = vadd.f32 %v1442, 19629.51
    %v1455 = vadd.f32 %v1443, 19629.51
    %v1456 = vadd.f32 %v1444, 19629.51
    %v1457 = vadd.f32 %v1445, 19629.51
    %v1458 = vadd.f32 %v1446, 19629.51
    %v1459 = vmul.f32 %v1447, %v1399
    %v1460 = vmul.f32 %v1448, %v1400
    %v1461 = vmul.f32 %v1449, %v1401
    %v1462 = vmul.f32 %v1450, %v1402
    %v1463 = vmul.f32 %v1451, %v1403
    %v1464 = vmul.f32 %v1452, %v1404
    %v1465 = vmul.f32 %v1453, %v1405
    %v1466 = vmul.f32 %v1454, %v1406
    %v1467 = vmul.f32 %v1455, %v1407
    %v1468 = vmul.f32 %v1456, %v1408
    %v1469 = vmul.f32 %v1457, %v1409
    %v1470 = vmul.f32 %v1458, %v1410
    %v1471 = vadd.f32 %v1459, 205786.22
    %v1472 = vadd.f32 %v1460, 205786.22
    %v1473 = vadd.f32 %v1461, 205786.22
    %v1474 = vadd.f32 %v1462, 205786.22
    %v1475 = vadd.f32 %v1463, 205786.22
    %v1476 = vadd.f32 %v1464, 205786.22
    %v1477 = vadd.f32 %v1465, 205786.22
    %v1478 = vadd.f32 %v1466, 205786.22
    %v1479 = vadd.f32 %v1467, 205786.22
    %v1480 = vadd.f32 %v1468, 205786.22
    %v1481 = vadd.f32 %v1469, 205786.22
    %v1482 = vadd.f32 %v1470, 205786.22
    %v1483 = vmul.f32 %v1471, %v1399
    %v1484 = vmul.f32 %v1472, %v1400
    %v1485 = vmul.f32 %v1473, %v1401
    %v1486 = vmul.f32 %v1474, %v1402
    %v1487 = vmul.f32 %v1475, %v1403
    %v1488 = vmul.f32 %v1476, %v1404
    %v1489 = vmul.f32 %v1477, %v1405
    %v1490 = vmul.f32 %v1478, %v1406
    %v1491 = vmul.f32 %v1479, %v1407
    %v1492 = vmul.f32 %v1480, %v1408
    %v1493 = vmul.f32 %v1481, %v1409
    %v1494 = vmul.f32 %v1482, %v1410
    %v1495 = vadd.f32 %v1483, 1312212.3
    %v1496 = vadd.f32 %v1484, 1312212.3
    %v1497 = vadd.f32 %v1485, 1312212.3
    %v1498 = vadd.f32 %v1486, 1312212.3
    %v1499 = vadd.f32 %v1487, 1312212.3
    %v1500 = vadd.f32 %v1488, 1312212.3
    %v1501 = vadd.f32 %v1489, 1312212.3
    %v1502 = vadd.f32 %v1490, 1312212.3
    %v1503 = vadd.f32 %v1491, 1312212.3
    %v1504 = vadd.f32 %v1492, 1312212.3
    %v1505 = vadd.f32 %v1493, 1312212.3
    %v1506 = vadd.f32 %v1494, 1312212.3
    %v1507 = vmul.f32 %v1495, %v1399
    %v1508 = vmul.f32 %v1496, %v1400
    %v1509 = vmul.f32 %v1497, %v1401
    %v1510 = vmul.f32 %v1498, %v1402
    %v1511 = vmul.f32 %v1499, %v1403
    %v1512 = vmul.f32 %v1500, %v1404
    %v1513 = vmul.f32 %v1501, %v1405
    %v1514 = vmul.f32 %v1502, %v1406
    %v1515 = vmul.f32 %v1503, %v1407
    %v1516 = vmul.f32 %v1504, %v1408
    %v1517 = vmul.f32 %v1505, %v1409
    %v1518 = vmul.f32 %v1506, %v1410
    %v1519 = vadd.f32 %v1507, 5092745.0
    %v1520 = vadd.f32 %v1508, 5092745.0
    %v1521 = vadd.f32 %v1509, 5092745.0
    %v1522 = vadd.f32 %v1510, 5092745.0
    %v1523 = vadd.f32 %v1511, 5092745.0
    %v1524 = vadd.f32 %v1512, 5092745.0
    %v1525 = vadd.f32 %v1513, 5092745.0
    %v1526 = vadd.f32 %v1514, 5092745.0
    %v1527 = vadd.f32 %v1515, 5092745.0
    %v1528 = vadd.f32 %v1516, 5092745.0
    %v1529 = vadd.f32 %v1517, 5092745.0
    %v1530 = vadd.f32 %v1518, 5092745.0
    %v1531 = vmul.f32 %v1519, %v1399
    %v1532 = vmul.f32 %v1520, %v1400
    %v1533 = vmul.f32 %v1521, %v1401
    %v1534 = vmul.f32 %v1522, %v1402
    %v1535 = vmul.f32 %v1523, %v1403
    %v1536 = vmul.f32 %v1524, %v1404
    %v1537 = vmul.f32 %v1525, %v1405
    %v1538 = vmul.f32 %v1526, %v1406
    %v1539 = vmul.f32 %v1527, %v1407
    %v1540 = vmul.f32 %v1528, %v1408
    %v1541 = vmul.f32 %v1529, %v1409
    %v1542 = vmul.f32 %v1530, %v1410
    %v1543 = vadd.f32 %v1531, 11137345.0
    %v1544 = vadd.f32 %v1532, 11137345.0
    %v1545 = vadd.f32 %v1533, 11137345.0
    %v1546 = vadd.f32 %v1534, 11137345.0
    %v1547 = vadd.f32 %v1535, 11137345.0
    %v1548 = vadd.f32 %v1536, 11137345.0
    %v1549 = vadd.f32 %v1537, 11137345.0
    %v1550 = vadd.f32 %v1538, 11137345.0
    %v1551 = vadd.f32 %v1539, 11137345.0
    %v1552 = vadd.f32 %v1540, 11137345.0
    %v1553 = vadd.f32 %v1541, 11137345.0
    %v1554 = vadd.f32 %v1542, 11137345.0
    %v1555 = vmul.f32 %v1543, %v1399
    %v1556 = vmul.f32 %v1544, %v1400
    %v1557 = vmul.f32 %v1545, %v1401
    %v1558 = vmul.f32 %v1546, %v1402
    %v1559 = vmul.f32 %v1547, %v1403
    %v1560 = vmul.f32 %v1548, %v1404
    %v1561 = vmul.f32 %v1549, %v1405
    %v1562 = vmul.f32 %v1550, %v1406
    %v1563 = vmul.f32 %v1551, %v1407
    %v1564 = vmul.f32 %v1552, %v1408
    %v1565 = vmul.f32 %v1553, %v1409
    %v1566 = vmul.f32 %v1554, %v1410
    %v1567 = vadd.f32 %v1555, 10579290.0
    %v1568 = vadd.f32 %v1556, 10579290.0
    %v1569 = vadd.f32 %v1557, 10579290.0
    %v1570 = vadd.f32 %v1558, 10579290.0
    %v1571 = vadd.f32 %v1559, 10579290.0
    %v1572 = vadd.f32 %v1560, 10579290.0
    %v1573 = vadd.f32 %v1561, 10579290.0
    %v1574 = vadd.f32 %v1562, 10579290.0
    %v1575 = vadd.f32 %v1563, 10579290.0
    %v1576 = vadd.f32 %v1564, 10579290.0
    %v1577 = vadd.f32 %v1565, 10579290.0
    %v1578 = vadd.f32 %v1566, 10579290.0
    %v1579 = vadd.f32 %v1399, 36.0
    %v1580 = vadd.f32 %v1400, 36.0
    %v1581 = vadd.f32 %v1401, 36.0
    %v1582 = vadd.f32 %v1402, 36.0
    %v1583 = vadd.f32 %v1403, 36.0
    %v1584 = vadd.f32 %v1404, 36.0
    %v1585 = vadd.f32 %v1405, 36.0
    %v1586 = vadd.f32 %v1406, 36.0
    %v1587 = vadd.f32 %v1407, 36.0
    %v1588 = vadd.f32 %v1408, 36.0
    %v1589 = vadd.f32 %v1409, 36.0
    %v1590 = vadd.f32 %v1410, 36.0
    %v1591 = vmul.f32 %v1579, %v1399
    %v1592 = vmul.f32 %v1580, %v1400
    %v1593 = vmul.f32 %v1581, %v1401
    %v1594 = vmul.f32 %v1582, %v1402
    %v1595 = vmul.f32 %v1583, %v1403
    %v1596 = vmul.f32 %v1584, %v1404
    %v1597 = vmul.f32 %v1585, %v1405
    %v1598 = vmul.f32 %v1586, %v1406
    %v1599 = vmul.f32 %v1587, %v1407
    %v1600 = vmul.f32 %v1588, %v1408
    %v1601 = vmul.f32 %v1589, %v1409
    %v1602 = vmul.f32 %v1590, %v1410
    %v1603 = vadd.f32 %v1591, 546.0
    %v1604 = vadd.f32 %v1592, 546.0
    %v1605 = vadd.f32 %v1593, 546.0
    %v1606 = vadd.f32 %v1594, 546.0
    %v1607 = vadd.f32 %v1595, 546.0
    %v1608 = vadd.f32 %v1596, 546.0
    %v1609 = vadd.f32 %v1597, 546.0
    %v1610 = vadd.f32 %v1598, 546.0
    %v1611 = vadd.f32 %v1599, 546.0
    %v1612 = vadd.f32 %v1600, 546.0
    %v1613 = vadd.f32 %v1601, 546.0
    %v1614 = vadd.f32 %v1602, 546.0
    %v1615 = vmul.f32 %v1603, %v1399
    %v1616 = vmul.f32 %v1604, %v1400
    %v1617 = vmul.f32 %v1605, %v1401
    %v1618 = vmul.f32 %v1606, %v1402
    %v1619 = vmul.f32 %v1607, %v1403
    %v1620 = vmul.f32 %v1608, %v1404
    %v1621 = vmul.f32 %v1609, %v1405
    %v1622 = vmul.f32 %v1610, %v1406
    %v1623 = vmul.f32 %v1611, %v1407
    %v1624 = vmul.f32 %v1612, %v1408
    %v1625 = vmul.f32 %v1613, %v1409
    %v1626 = vmul.f32 %v1614, %v1410
    %v1627 = vadd.f32 %v1615, 4536.0
    %v1628 = vadd.f32 %v1616, 4536.0
    %v1629 = vadd.f32 %v1617, 4536.0
    %v1630 = vadd.f32 %v1618, 4536.0
    %v1631 = vadd.f32 %v1619, 4536.0
    %v1632 = vadd.f32 %v1620, 4536.0
    %v1633 = vadd.f32 %v1621, 4536.0
    %v1634 = vadd.f32 %v1622, 4536.0
    %v1635 = vadd.f32 %v1623, 4536.0
    %v1636 = vadd.f32 %v1624, 4536.0
    %v1637 = vadd.f32 %v1625, 4536.0
    %v1638 = vadd.f32 %v1626, 4536.0
    %v1639 = vmul.f32 %v1627, %v1399
    %v1640 = vmul.f32 %v1628, %v1400
    %v1641 = vmul.f32 %v1629, %v1401
    %v1642 = vmul.f32 %v1630, %v1402
    %v1643 = vmul.f32 %v1631, %v1403
    %v1644 = vmul.f32 %v1632, %v1404
    %v1645 = vmul.f32 %v1633, %v1405
    %v1646 = vmul.f32 %v1634, %v1406
    %v1647 = vmul.f32 %v1635, %v1407
    %v1648 = vmul.f32 %v1636, %v1408
    %v1649 = vmul.f32 %v1637, %v1409
    %v1650 = vmul.f32 %v1638, %v1410
    %v1651 = vadd.f32 %v1639, 22449.0
    %v1652 = vadd.f32 %v1640, 22449.0
    %v1653 = vadd.f32 %v1641, 22449.0
    %v1654 = vadd.f32 %v1642, 22449.0
    %v1655 = vadd.f32 %v1643, 22449.0
    %v1656 = vadd.f32 %v1644, 22449.0
    %v1657 = vadd.f32 %v1645, 22449.0
    %v1658 = vadd.f32 %v1646, 22449.0
    %v1659 = vadd.f32 %v1647, 22449.0
    %v1660 = vadd.f32 %v1648, 22449.0
    %v1661 = vadd.f32 %v1649, 22449.0
    %v1662 = vadd.f32 %v1650, 22449.0
    %v1663 = vmul.f32 %v1651, %v1399
    %v1664 = vmul.f32 %v1652, %v1400
    %v1665 = vmul.f32 %v1653, %v1401
    %v1666 = vmul.f32 %v1654, %v1402
    %v1667 = vmul.f32 %v1655, %v1403
    %v1668 = vmul.f32 %v1656, %v1404
    %v1669 = vmul.f32 %v1657, %v1405
    %v1670 = vmul.f32 %v1658, %v1406
    %v1671 = vmul.f32 %v1659, %v1407
    %v1672 = vmul.f32 %v1660, %v1408
    %v1673 = vmul.f32 %v1661, %v1409
    %v1674 = vmul.f32 %v1662, %v1410
    %v1675 = vadd.f32 %v1663, 67284.0
    %v1676 = vadd.f32 %v1664, 67284.0
    %v1677 = vadd.f32 %v1665, 67284.0
    %v1678 = vadd.f32 %v1666, 67284.0
    %v1679 = vadd.f32 %v1667, 67284.0
    %v1680 = vadd.f32 %v1668, 67284.0
    %v1681 = vadd.f32 %v1669, 67284.0
    %v1682 = vadd.f32 %v1670, 67284.0
    %v1683 = vadd.f32 %v1671, 67284.0
    %v1684 = vadd.f32 %v1672, 67284.0
    %v1685 = vadd.f32 %v1673, 67284.0
    %v1686 = vadd.f32 %v1674, 67284.0
    %v1687 = vmul.f32 %v1675, %v1399
    %v1688 = vmul.f32 %v1676, %v1400
    %v1689 = vmul.f32 %v1677, %v1401
    %v1690 = vmul.f32 %v1678, %v1402
    %v1691 = vmul.f32 %v1679, %v1403
    %v1692 = vmul.f32 %v1680, %v1404
    %v1693 = vmul.f32 %v1681, %v1405
    %v1694 = vmul.f32 %v1682, %v1406
    %v1695 = vmul.f32 %v1683, %v1407
    %v1696 = vmul.f32 %v1684, %v1408
    %v1697 = vmul.f32 %v1685, %v1409
    %v1698 = vmul.f32 %v1686, %v1410
    %v1699 = vadd.f32 %v1687, 118124.0
    %v1700 = vadd.f32 %v1688, 118124.0
    %v1701 = vadd.f32 %v1689, 118124.0
    %v1702 = vadd.f32 %v1690, 118124.0
    %v1703 = vadd.f32 %v1691, 118124.0
    %v1704 = vadd.f32 %v1692, 118124.0
    %v1705 = vadd.f32 %v1693, 118124.0
    %v1706 = vadd.f32 %v1694, 118124.0
    %v1707 = vadd.f32 %v1695, 118124.0
    %v1708 = vadd.f32 %v1696, 118124.0
    %v1709 = vadd.f32 %v1697, 118124.0
    %v1710 = vadd.f32 %v1698, 118124.0
    %v1711 = vmul.f32 %v1699, %v1399
    %v1712 = vmul.f32 %v1700, %v1400
    %v1713 = vmul.f32 %v1701, %v1401
    %v1714 = vmul.f32 %v1702, %v1402
    %v1715 = vmul.f32 %v1703, %v1403
    %v1716 = vmul.f32 %v1704, %v1404
    %v1717 = vmul.f32 %v1705, %v1405
    %v1718 = vmul.f32 %v1706, %v1406
    %v1719 = vmul.f32 %v1707, %v1407
    %v1720 = vmul.f32 %v1708, %v1408
    %v1721 = vmul.f32 %v1709, %v1409
    %v1722 = vmul.f32 %v1710, %v1410
    %v1723 = vadd.f32 %v1711, 109584.0
    %v1724 = vadd.f32 %v1712, 109584.0
    %v1725 = vadd.f32 %v1713, 109584.0
    %v1726 = vadd.f32 %v1714, 109584.0
    %v1727 = vadd.f32 %v1715, 109584.0
    %v1728 = vadd.f32 %v1716, 109584.0
    %v1729 = vadd.f32 %v1717, 109584.0
    %v1730 = vadd.f32 %v1718, 109584.0
    %v1731 = vadd.f32 %v1719, 109584.0
    %v1732 = vadd.f32 %v1720, 109584.0
    %v1733 = vadd.f32 %v1721, 109584.0
    %v1734 = vadd.f32 %v1722, 109584.0
    %v1735 = vmul.f32 %v1723, %v1399
    %v1736 = vmul.f32 %v1724, %v1400
    %v1737 = vmul.f32 %v1725, %v1401
    %v1738 = vmul.f32 %v1726, %v1402
    %v1739 = vmul.f32 %v1727, %v1403
    %v1740 = vmul.f32 %v1728, %v1404
    %v1741 = vmul.f32 %v1729, %v1405
    %v1742 = vmul.f32 %v1730, %v1406
    %v1743 = vmul.f32 %v1731, %v1407
    %v1744 = vmul.f32 %v1732, %v1408
    %v1745 = vmul.f32 %v1733, %v1409
    %v1746 = vmul.f32 %v1734, %v1410
    %v1747 = vadd.f32 %v1735, 40320.0
    %v1748 = vadd.f32 %v1736, 40320.0
    %v1749 = vadd.f32 %v1737, 40320.0
    %v1750 = vadd.f32 %v1738, 40320.0
    %v1751 = vadd.f32 %v1739, 40320.0
    %v1752 = vadd.f32 %v1740, 40320.0
    %v1753 = vadd.f32 %v1741, 40320.0
    %v1754 = vadd.f32 %v1742, 40320.0
    %v1755 = vadd.f32 %v1743, 40320.0
    %v1756 = vadd.f32 %v1744, 40320.0
    %v1757 = vadd.f32 %v1745, 40320.0
    %v1758 = vadd.f32 %v1746, 40320.0
    %v1759 = vrcp.pop %v1747
    %v1760 = vrcp.pop %v1748
    %v1761 = vrcp.pop %v1749
    %v1762 = vrcp.pop %v1750
    %v1763 = vrcp.pop %v1751
    %v1764 = vrcp.pop %v1752
    %v1765 = vrcp.pop %v1753
    %v1766 = vrcp.pop %v1754
    %v1767 = vrcp.pop %v1755
    %v1768 = vrcp.pop %v1756
    %v1769 = vrcp.pop %v1757
    %v1770 = vrcp.pop %v1758
    %v1771 = vmul.f32 %v1747, %v1759
    %v1772 = vmul.f32 %v1748, %v1760
    %v1773 = vmul.f32 %v1749, %v1761
    %v1774 = vmul.f32 %v1750, %v1762
    %v1775 = vmul.f32 %v1751, %v1763
    %v1776 = vmul.f32 %v1752, %v1764
    %v1777 = vmul.f32 %v1753, %v1765
    %v1778 = vmul.f32 %v1754, %v1766
    %v1779 = vmul.f32 %v1755, %v1767
    %v1780 = vmul.f32 %v1756, %v1768
    %v1781 = vmul.f32 %v1757, %v1769
    %v1782 = vmul.f32 %v1758, %v1770
    %v1783 = vsub.f32 2.0, %v1771
    %v1784 = vsub.f32 2.0, %v1772
    %v1785 = vsub.f32 2.0, %v1773
    %v1786 = vsub.f32 2.0, %v1774
    %v1787 = vsub.f32 2.0, %v1775
    %v1788 = vsub.f32 2.0, %v1776
    %v1789 = vsub.f32 2.0, %v1777
    %v1790 = vsub.f32 2.0, %v1778
    %v1791 = vsub.f32 2.0, %v1779
    %v1792 = vsub.f32 2.0, %v1780
    %v1793 = vsub.f32 2.0, %v1781
    %v1794 = vsub.f32 2.0, %v1782
    %v1795 = vmul.f32 %v1759, %v1783
    %v1796 = vmul.f32 %v1760, %v1784
    %v1797 = vmul.f32 %v1761, %v1785
    %v1798 = vmul.f32 %v1762, %v1786
    %v1799 = vmul.f32 %v1763, %v1787
    %v1800 = vmul.f32 %v1764, %v1788
    %v1801 = vmul.f32 %v1765, %v1789
    %v1802 = vmul.f32 %v1766, %v1790
    %v1803 = vmul.f32 %v1767, %v1791
    %v1804 = vmul.f32 %v1768, %v1792
    %v1805 = vmul.f32 %v1769, %v1793
    %v1806 = vmul.f32 %v1770, %v1794
    %v1807 = vmul.f32 %v1567, %v1795
    %v1808 = vmul.f32 %v1568, %v1796
    %v1809 = vmul.f32 %v1569, %v1797
    %v1810 = vmul.f32 %v1570, %v1798
    %v1811 = vmul.f32 %v1571, %v1799
    %v1812 = vmul.f32 %v1572, %v1800
    %v1813 = vmul.f32 %v1573, %v1801
    %v1814 = vmul.f32 %v1574, %v1802
    %v1815 = vmul.f32 %v1575, %v1803
    %v1816 = vmul.f32 %v1576, %v1804
    %v1817 = vmul.f32 %v1577, %v1805
    %v1818 = vmul.f32 %v1578, %v1806
    %v1819 = vadd.f32 %v1807, 1.0
    %v1820 = vadd.f32 %v1808, 1.0
    %v1821 = vadd.f32 %v1809, 1.0
    %v1822 = vadd.f32 %v1810, 1.0
    %v1823 = vadd.f32 %v1811, 1.0
    %v1824 = vadd.f32 %v1812, 1.0
    %v1825 = vadd.f32 %v1813, 1.0
    %v1826 = vadd.f32 %v1814, 1.0
    %v1827 = vadd.f32 %v1815, 1.0
    %v1828 = vadd.f32 %v1816, 1.0
    %v1829 = vadd.f32 %v1817, 1.0
    %v1830 = vadd.f32 %v1818, 1.0
    %v1831 = vadd.f32 %v1375, 6.5
    %v1832 = vadd.f32 %v1376, 6.5
    %v1833 = vadd.f32 %v1377, 6.5
    %v1834 = vadd.f32 %v1378, 6.5
    %v1835 = vadd.f32 %v1379, 6.5
    %v1836 = vadd.f32 %v1380, 6.5
    %v1837 = vadd.f32 %v1381, 6.5
    %v1838 = vadd.f32 %v1382, 6.5
    %v1839 = vadd.f32 %v1383, 6.5
    %v1840 = vadd.f32 %v1384, 6.5
    %v1841 = vadd.f32 %v1385, 6.5
    %v1842 = vadd.f32 %v1386, 6.5
    %v1843 = vsub.f32 %v1375, 0.5
    %v1844 = vsub.f32 %v1376, 0.5
    %v1845 = vsub.f32 %v1377, 0.5
    %v1846 = vsub.f32 %v1378, 0.5
    %v1847 = vsub.f32 %v1379, 0.5
    %v1848 = vsub.f32 %v1380, 0.5
    %v1849 = vsub.f32 %v1381, 0.5
    %v1850 = vsub.f32 %v1382, 0.5
    %v1851 = vsub.f32 %v1383, 0.5
    %v1852 = vsub.f32 %v1384, 0.5
    %v1853 = vsub.f32 %v1385, 0.5
    %v1854 = vsub.f32 %v1386, 0.5
    %v1855 = vlog2.pop %v1831
    %v1856 = vmul.f32 %v1855, 0.6931472
    %v1857 = vlog2.pop %v1832
    %v1858 = vmul.f32 %v1857, 0.6931472
    %v1859 = vlog2.pop %v1833
    %v1860 = vmul.f32 %v1859, 0.6931472
    %v1861 = vlog2.pop %v1834
    %v1862 = vmul.f32 %v1861, 0.6931472
    %v1863 = vlog2.pop %v1835
    %v1864 = vmul.f32 %v1863, 0.6931472
    %v1865 = vlog2.pop %v1836
    %v1866 = vmul.f32 %v1865, 0.6931472
    %v1867 = vlog2.pop %v1837
    %v1868 = vmul.f32 %v1867, 0.6931472
    %v1869 = vlog2.pop %v1838
    %v1870 = vmul.f32 %v1869, 0.6931472
    %v1871 = vlog2.pop %v1839
    %v1872 = vmul.f32 %v1871, 0.6931472
    %v1873 = vlog2.pop %v1840
    %v1874 = vmul.f32 %v1873, 0.6931472
    %v1875 = vlog2.pop %v1841
    %v1876 = vmul.f32 %v1875, 0.6931472
    %v1877 = vlog2.pop %v1842
    %v1878 = vmul.f32 %v1877, 0.6931472
    %v1879 = vmul.f32 %v1843, %v1856
    %v1880 = vmul.f32 %v1844, %v1858
    %v1881 = vmul.f32 %v1845, %v1860
    %v1882 = vmul.f32 %v1846, %v1862
    %v1883 = vmul.f32 %v1847, %v1864
    %v1884 = vmul.f32 %v1848, %v1866
    %v1885 = vmul.f32 %v1849, %v1868
    %v1886 = vmul.f32 %v1850, %v1870
    %v1887 = vmul.f32 %v1851, %v1872
    %v1888 = vmul.f32 %v1852, %v1874
    %v1889 = vmul.f32 %v1853, %v1876
    %v1890 = vmul.f32 %v1854, %v1878
    %v1891 = vadd.f32 %v1879, 0.9189385
    %v1892 = vadd.f32 %v1880, 0.9189385
    %v1893 = vadd.f32 %v1881, 0.9189385
    %v1894 = vadd.f32 %v1882, 0.9189385
    %v1895 = vadd.f32 %v1883, 0.9189385
    %v1896 = vadd.f32 %v1884, 0.9189385
    %v1897 = vadd.f32 %v1885, 0.9189385
    %v1898 = vadd.f32 %v1886, 0.9189385
    %v1899 = vadd.f32 %v1887, 0.9189385
    %v1900 = vadd.f32 %v1888, 0.9189385
    %v1901 = vadd.f32 %v1889, 0.9189385
    %v1902 = vadd.f32 %v1890, 0.9189385
    %v1903 = vsub.f32 %v1891, %v1831
    %v1904 = vsub.f32 %v1892, %v1832
    %v1905 = vsub.f32 %v1893, %v1833
    %v1906 = vsub.f32 %v1894, %v1834
    %v1907 = vsub.f32 %v1895, %v1835
    %v1908 = vsub.f32 %v1896, %v1836
    %v1909 = vsub.f32 %v1897, %v1837
    %v1910 = vsub.f32 %v1898, %v1838
    %v1911 = vsub.f32 %v1899, %v1839
    %v1912 = vsub.f32 %v1900, %v1840
    %v1913 = vsub.f32 %v1901, %v1841
    %v1914 = vsub.f32 %v1902, %v1842
    %v1915 = vsub.f32 %v811, %v176
    %v1916 = vsub.f32 %v812, %v178
    %v1917 = vsub.f32 %v813, %v180
    %v1918 = vsub.f32 %v814, %v182
    %v1919 = vsub.f32 %v815, %v184
    %v1920 = vsub.f32 %v816, %v186
    %v1921 = vsub.f32 %v817, %v188
    %v1922 = vsub.f32 %v818, %v190
    %v1923 = vsub.f32 %v819, %v192
    %v1924 = vsub.f32 %v820, %v194
    %v1925 = vsub.f32 %v821, %v196
    %v1926 = vsub.f32 %v822, %v198
    %v1927 = vadd.f32 %v1915, %v1351
    %v1928 = vadd.f32 %v1916, %v1352
    %v1929 = vadd.f32 %v1917, %v1353
    %v1930 = vadd.f32 %v1918, %v1354
    %v1931 = vadd.f32 %v1919, %v1355
    %v1932 = vadd.f32 %v1920, %v1356
    %v1933 = vadd.f32 %v1921, %v1357
    %v1934 = vadd.f32 %v1922, %v1358
    %v1935 = vadd.f32 %v1923, %v1359
    %v1936 = vadd.f32 %v1924, %v1360
    %v1937 = vadd.f32 %v1925, %v1361
    %v1938 = vadd.f32 %v1926, %v1362
    %v1939 = vsub.f32 %v1927, %v1903
    %v1940 = vsub.f32 %v1928, %v1904
    %v1941 = vsub.f32 %v1929, %v1905
    %v1942 = vsub.f32 %v1930, %v1906
    %v1943 = vsub.f32 %v1931, %v1907
    %v1944 = vsub.f32 %v1932, %v1908
    %v1945 = vsub.f32 %v1933, %v1909
    %v1946 = vsub.f32 %v1934, %v1910
    %v1947 = vsub.f32 %v1935, %v1911
    %v1948 = vsub.f32 %v1936, %v1912
    %v1949 = vsub.f32 %v1937, %v1913
    %v1950 = vsub.f32 %v1938, %v1914
    %v1951 = vmul.f32 %v727, %v1267
    %v1952 = vmul.f32 %v728, %v1268
    %v1953 = vmul.f32 %v729, %v1269
    %v1954 = vmul.f32 %v730, %v1270
    %v1955 = vmul.f32 %v731, %v1271
    %v1956 = vmul.f32 %v732, %v1272
    %v1957 = vmul.f32 %v733, %v1273
    %v1958 = vmul.f32 %v734, %v1274
    %v1959 = vmul.f32 %v735, %v1275
    %v1960 = vmul.f32 %v736, %v1276
    %v1961 = vmul.f32 %v737, %v1277
    %v1962 = vmul.f32 %v738, %v1278
    %v1963 = vrcp.pop %v1819
    %v1964 = vrcp.pop %v1820
    %v1965 = vrcp.pop %v1821
    %v1966 = vrcp.pop %v1822
    %v1967 = vrcp.pop %v1823
    %v1968 = vrcp.pop %v1824
    %v1969 = vrcp.pop %v1825
    %v1970 = vrcp.pop %v1826
    %v1971 = vrcp.pop %v1827
    %v1972 = vrcp.pop %v1828
    %v1973 = vrcp.pop %v1829
    %v1974 = vrcp.pop %v1830
    %v1975 = vmul.f32 %v1819, %v1963
    %v1976 = vmul.f32 %v1820, %v1964
    %v1977 = vmul.f32 %v1821, %v1965
    %v1978 = vmul.f32 %v1822, %v1966
    %v1979 = vmul.f32 %v1823, %v1967
    %v1980 = vmul.f32 %v1824, %v1968
    %v1981 = vmul.f32 %v1825, %v1969
    %v1982 = vmul.f32 %v1826, %v1970
    %v1983 = vmul.f32 %v1827, %v1971
    %v1984 = vmul.f32 %v1828, %v1972
    %v1985 = vmul.f32 %v1829, %v1973
    %v1986 = vmul.f32 %v1830, %v1974
    %v1987 = vsub.f32 2.0, %v1975
    %v1988 = vsub.f32 2.0, %v1976
    %v1989 = vsub.f32 2.0, %v1977
    %v1990 = vsub.f32 2.0, %v1978
    %v1991 = vsub.f32 2.0, %v1979
    %v1992 = vsub.f32 2.0, %v1980
    %v1993 = vsub.f32 2.0, %v1981
    %v1994 = vsub.f32 2.0, %v1982
    %v1995 = vsub.f32 2.0, %v1983
    %v1996 = vsub.f32 2.0, %v1984
    %v1997 = vsub.f32 2.0, %v1985
    %v1998 = vsub.f32 2.0, %v1986
    %v1999 = vmul.f32 %v1963, %v1987
    %v2000 = vmul.f32 %v1964, %v1988
    %v2001 = vmul.f32 %v1965, %v1989
    %v2002 = vmul.f32 %v1966, %v1990
    %v2003 = vmul.f32 %v1967, %v1991
    %v2004 = vmul.f32 %v1968, %v1992
    %v2005 = vmul.f32 %v1969, %v1993
    %v2006 = vmul.f32 %v1970, %v1994
    %v2007 = vmul.f32 %v1971, %v1995
    %v2008 = vmul.f32 %v1972, %v1996
    %v2009 = vmul.f32 %v1973, %v1997
    %v2010 = vmul.f32 %v1974, %v1998
    %v2011 = vmul.f32 %v1951, %v1999
    %v2012 = vmul.f32 %v1952, %v2000
    %v2013 = vmul.f32 %v1953, %v2001
    %v2014 = vmul.f32 %v1954, %v2002
    %v2015 = vmul.f32 %v1955, %v2003
    %v2016 = vmul.f32 %v1956, %v2004
    %v2017 = vmul.f32 %v1957, %v2005
    %v2018 = vmul.f32 %v1958, %v2006
    %v2019 = vmul.f32 %v1959, %v2007
    %v2020 = vmul.f32 %v1960, %v2008
    %v2021 = vmul.f32 %v1961, %v2009
    %v2022 = vmul.f32 %v1962, %v2010
    %v2023 = vlog2.pop %v2011
    %v2024 = vmul.f32 %v2023, 0.6931472
    %v2025 = vlog2.pop %v2012
    %v2026 = vmul.f32 %v2025, 0.6931472
    %v2027 = vlog2.pop %v2013
    %v2028 = vmul.f32 %v2027, 0.6931472
    %v2029 = vlog2.pop %v2014
    %v2030 = vmul.f32 %v2029, 0.6931472
    %v2031 = vlog2.pop %v2015
    %v2032 = vmul.f32 %v2031, 0.6931472
    %v2033 = vlog2.pop %v2016
    %v2034 = vmul.f32 %v2033, 0.6931472
    %v2035 = vlog2.pop %v2017
    %v2036 = vmul.f32 %v2035, 0.6931472
    %v2037 = vlog2.pop %v2018
    %v2038 = vmul.f32 %v2037, 0.6931472
    %v2039 = vlog2.pop %v2019
    %v2040 = vmul.f32 %v2039, 0.6931472
    %v2041 = vlog2.pop %v2020
    %v2042 = vmul.f32 %v2041, 0.6931472
    %v2043 = vlog2.pop %v2021
    %v2044 = vmul.f32 %v2043, 0.6931472
    %v2045 = vlog2.pop %v2022
    %v2046 = vmul.f32 %v2045, 0.6931472
    %v2047 = vadd.f32 %v1939, %v2024
    %v2048 = vadd.f32 %v1940, %v2026
    %v2049 = vadd.f32 %v1941, %v2028
    %v2050 = vadd.f32 %v1942, %v2030
    %v2051 = vadd.f32 %v1943, %v2032
    %v2052 = vadd.f32 %v1944, %v2034
    %v2053 = vadd.f32 %v1945, %v2036
    %v2054 = vadd.f32 %v1946, %v2038
    %v2055 = vadd.f32 %v1947, %v2040
    %v2056 = vadd.f32 %v1948, %v2042
    %v2057 = vadd.f32 %v1949, %v2044
    %v2058 = vadd.f32 %v1950, %v2046
    %v2059 = vsub.f32 %v224, %v176
    %v2060 = vsub.f32 %v226, %v178
    %v2061 = vsub.f32 %v228, %v180
    %v2062 = vsub.f32 %v230, %v182
    %v2063 = vsub.f32 %v232, %v184
    %v2064 = vsub.f32 %v234, %v186
    %v2065 = vsub.f32 %v236, %v188
    %v2066 = vsub.f32 %v238, %v190
    %v2067 = vsub.f32 %v240, %v192
    %v2068 = vsub.f32 %v242, %v194
    %v2069 = vsub.f32 %v244, %v196
    %v2070 = vsub.f32 %v246, %v198
    %v2071 = vmul.f32 %v127, %v2059
    %v2072 = vmul.f32 %v128, %v2060
    %v2073 = vmul.f32 %v129, %v2061
    %v2074 = vmul.f32 %v130, %v2062
    %v2075 = vmul.f32 %v131, %v2063
    %v2076 = vmul.f32 %v132, %v2064
    %v2077 = vmul.f32 %v133, %v2065
    %v2078 = vmul.f32 %v134, %v2066
    %v2079 = vmul.f32 %v135, %v2067
    %v2080 = vmul.f32 %v136, %v2068
    %v2081 = vmul.f32 %v137, %v2069
    %v2082 = vmul.f32 %v138, %v2070
    %v2083 = vsub.f32 %v224, %v260
    %v2084 = vsub.f32 %v226, %v262
    %v2085 = vsub.f32 %v228, %v264
    %v2086 = vsub.f32 %v230, %v266
    %v2087 = vsub.f32 %v232, %v268
    %v2088 = vsub.f32 %v234, %v270
    %v2089 = vsub.f32 %v236, %v272
    %v2090 = vsub.f32 %v238, %v274
    %v2091 = vsub.f32 %v240, %v276
    %v2092 = vsub.f32 %v242, %v278
    %v2093 = vsub.f32 %v244, %v280
    %v2094 = vsub.f32 %v246, %v282
    %v2095 = vmul.f32 %v115, %v2083
    %v2096 = vmul.f32 %v116, %v2084
    %v2097 = vmul.f32 %v117, %v2085
    %v2098 = vmul.f32 %v118, %v2086
    %v2099 = vmul.f32 %v119, %v2087
    %v2100 = vmul.f32 %v120, %v2088
    %v2101 = vmul.f32 %v121, %v2089
    %v2102 = vmul.f32 %v122, %v2090
    %v2103 = vmul.f32 %v123, %v2091
    %v2104 = vmul.f32 %v124, %v2092
    %v2105 = vmul.f32 %v125, %v2093
    %v2106 = vmul.f32 %v126, %v2094
    %v2107 = vadd.f32 %v2071, %v2095
    %v2108 = vadd.f32 %v2072, %v2096
    %v2109 = vadd.f32 %v2073, %v2097
    %v2110 = vadd.f32 %v2074, %v2098
    %v2111 = vadd.f32 %v2075, %v2099
    %v2112 = vadd.f32 %v2076, %v2100
    %v2113 = vadd.f32 %v2077, %v2101
    %v2114 = vadd.f32 %v2078, %v2102
    %v2115 = vadd.f32 %v2079, %v2103
    %v2116 = vadd.f32 %v2080, %v2104
    %v2117 = vadd.f32 %v2081, %v2105
    %v2118 = vadd.f32 %v2082, %v2106
    %v2119 = vsub.f32 0.0, %v2071
    %v2120 = vsub.f32 0.0, %v2072
    %v2121 = vsub.f32 0.0, %v2073
    %v2122 = vsub.f32 0.0, %v2074
    %v2123 = vsub.f32 0.0, %v2075
    %v2124 = vsub.f32 0.0, %v2076
    %v2125 = vsub.f32 0.0, %v2077
    %v2126 = vsub.f32 0.0, %v2078
    %v2127 = vsub.f32 0.0, %v2079
    %v2128 = vsub.f32 0.0, %v2080
    %v2129 = vsub.f32 0.0, %v2081
    %v2130 = vsub.f32 0.0, %v2082
    %v2131 = vmul.f32 %v2119, 1.442695
    %v2132 = vpow.pop %v2131
    %v2133 = vmul.f32 %v2120, 1.442695
    %v2134 = vpow.pop %v2133
    %v2135 = vmul.f32 %v2121, 1.442695
    %v2136 = vpow.pop %v2135
    %v2137 = vmul.f32 %v2122, 1.442695
    %v2138 = vpow.pop %v2137
    %v2139 = vmul.f32 %v2123, 1.442695
    %v2140 = vpow.pop %v2139
    %v2141 = vmul.f32 %v2124, 1.442695
    %v2142 = vpow.pop %v2141
    %v2143 = vmul.f32 %v2125, 1.442695
    %v2144 = vpow.pop %v2143
    %v2145 = vmul.f32 %v2126, 1.442695
    %v2146 = vpow.pop %v2145
    %v2147 = vmul.f32 %v2127, 1.442695
    %v2148 = vpow.pop %v2147
    %v2149 = vmul.f32 %v2128, 1.442695
    %v2150 = vpow.pop %v2149
    %v2151 = vmul.f32 %v2129, 1.442695
    %v2152 = vpow.pop %v2151
    %v2153 = vmul.f32 %v2130, 1.442695
    %v2154 = vpow.pop %v2153
    %vm2155 = vcmp.le.f32.partialorder %v115, 1e-08
    %vm2156 = vcmp.le.f32.partialorder %v116, 1e-08
    %vm2157 = vcmp.le.f32.partialorder %v117, 1e-08
    %vm2158 = vcmp.le.f32.partialorder %v118, 1e-08
    %vm2159 = vcmp.le.f32.partialorder %v119, 1e-08
    %vm2160 = vcmp.le.f32.partialorder %v120, 1e-08
    %vm2161 = vcmp.le.f32.partialorder %v121, 1e-08
    %vm2162 = vcmp.le.f32.partialorder %v122, 1e-08
    %vm2163 = vcmp.le.f32.partialorder %v123, 1e-08
    %vm2164 = vcmp.le.f32.partialorder %v124, 1e-08
    %vm2165 = vcmp.le.f32.partialorder %v125, 1e-08
    %vm2166 = vcmp.le.f32.partialorder %v126, 1e-08
    %v2167 = vsub.f32 1.0, %v139
    %v2168 = vsub.f32 1.0, %v140
    %v2169 = vsub.f32 1.0, %v141
    %v2170 = vsub.f32 1.0, %v142
    %v2171 = vsub.f32 1.0, %v143
    %v2172 = vsub.f32 1.0, %v144
    %v2173 = vsub.f32 1.0, %v145
    %v2174 = vsub.f32 1.0, %v146
    %v2175 = vsub.f32 1.0, %v147
    %v2176 = vsub.f32 1.0, %v148
    %v2177 = vsub.f32 1.0, %v149
    %v2178 = vsub.f32 1.0, %v150
    %v2179 = vmul.f32 %v2167, %v2132
    %v2180 = vmul.f32 %v2168, %v2134
    %v2181 = vmul.f32 %v2169, %v2136
    %v2182 = vmul.f32 %v2170, %v2138
    %v2183 = vmul.f32 %v2171, %v2140
    %v2184 = vmul.f32 %v2172, %v2142
    %v2185 = vmul.f32 %v2173, %v2144
    %v2186 = vmul.f32 %v2174, %v2146
    %v2187 = vmul.f32 %v2175, %v2148
    %v2188 = vmul.f32 %v2176, %v2150
    %v2189 = vmul.f32 %v2177, %v2152
    %v2190 = vmul.f32 %v2178, %v2154
    %v2191 = vadd.f32 %v139, %v2179
    %v2192 = vadd.f32 %v140, %v2180
    %v2193 = vadd.f32 %v141, %v2181
    %v2194 = vadd.f32 %v142, %v2182
    %v2195 = vadd.f32 %v143, %v2183
    %v2196 = vadd.f32 %v144, %v2184
    %v2197 = vadd.f32 %v145, %v2185
    %v2198 = vadd.f32 %v146, %v2186
    %v2199 = vadd.f32 %v147, %v2187
    %v2200 = vadd.f32 %v148, %v2188
    %v2201 = vadd.f32 %v149, %v2189
    %v2202 = vadd.f32 %v150, %v2190
    %v2203 = vadd.f32 %v2191, 1e-10
    %v2204 = vadd.f32 %v2192, 1e-10
    %v2205 = vadd.f32 %v2193, 1e-10
    %v2206 = vadd.f32 %v2194, 1e-10
    %v2207 = vadd.f32 %v2195, 1e-10
    %v2208 = vadd.f32 %v2196, 1e-10
    %v2209 = vadd.f32 %v2197, 1e-10
    %v2210 = vadd.f32 %v2198, 1e-10
    %v2211 = vadd.f32 %v2199, 1e-10
    %v2212 = vadd.f32 %v2200, 1e-10
    %v2213 = vadd.f32 %v2201, 1e-10
    %v2214 = vadd.f32 %v2202, 1e-10
    %v2215 = vadd.f32 %v2167, 1e-10
    %v2216 = vadd.f32 %v2168, 1e-10
    %v2217 = vadd.f32 %v2169, 1e-10
    %v2218 = vadd.f32 %v2170, 1e-10
    %v2219 = vadd.f32 %v2171, 1e-10
    %v2220 = vadd.f32 %v2172, 1e-10
    %v2221 = vadd.f32 %v2173, 1e-10
    %v2222 = vadd.f32 %v2174, 1e-10
    %v2223 = vadd.f32 %v2175, 1e-10
    %v2224 = vadd.f32 %v2176, 1e-10
    %v2225 = vadd.f32 %v2177, 1e-10
    %v2226 = vadd.f32 %v2178, 1e-10
    %v2227 = vsel %vm2155, %v2203, %v2215
    %v2228 = vsel %vm2156, %v2204, %v2216
    %v2229 = vsel %vm2157, %v2205, %v2217
    %v2230 = vsel %vm2158, %v2206, %v2218
    %v2231 = vsel %vm2159, %v2207, %v2219
    %v2232 = vsel %vm2160, %v2208, %v2220
    %v2233 = vsel %vm2161, %v2209, %v2221
    %v2234 = vsel %vm2162, %v2210, %v2222
    %v2235 = vsel %vm2163, %v2211, %v2223
    %v2236 = vsel %vm2164, %v2212, %v2224
    %v2237 = vsel %vm2165, %v2213, %v2225
    %v2238 = vsel %vm2166, %v2214, %v2226
    %v2239 = vadd.f32 %v2047, %v2107
    %v2240 = vadd.f32 %v2048, %v2108
    %v2241 = vadd.f32 %v2049, %v2109
    %v2242 = vadd.f32 %v2050, %v2110
    %v2243 = vadd.f32 %v2051, %v2111
    %v2244 = vadd.f32 %v2052, %v2112
    %v2245 = vadd.f32 %v2053, %v2113
    %v2246 = vadd.f32 %v2054, %v2114
    %v2247 = vadd.f32 %v2055, %v2115
    %v2248 = vadd.f32 %v2056, %v2116
    %v2249 = vadd.f32 %v2057, %v2117
    %v2250 = vadd.f32 %v2058, %v2118
    %v2251 = vsel %vm2155, 0.0, %v2239
    %v2252 = vsel %vm2156, 0.0, %v2240
    %v2253 = vsel %vm2157, 0.0, %v2241
    %v2254 = vsel %vm2158, 0.0, %v2242
    %v2255 = vsel %vm2159, 0.0, %v2243
    %v2256 = vsel %vm2160, 0.0, %v2244
    %v2257 = vsel %vm2161, 0.0, %v2245
    %v2258 = vsel %vm2162, 0.0, %v2246
    %v2259 = vsel %vm2163, 0.0, %v2247
    %v2260 = vsel %vm2164, 0.0, %v2248
    %v2261 = vsel %vm2165, 0.0, %v2249
    %v2262 = vsel %vm2166, 0.0, %v2250
    %v2263 = vlog2.pop %v2227
    %v2264 = vmul.f32 %v2263, 0.6931472
    %v2265 = vlog2.pop %v2228
    %v2266 = vmul.f32 %v2265, 0.6931472
    %v2267 = vlog2.pop %v2229
    %v2268 = vmul.f32 %v2267, 0.6931472
    %v2269 = vlog2.pop %v2230
    %v2270 = vmul.f32 %v2269, 0.6931472
    %v2271 = vlog2.pop %v2231
    %v2272 = vmul.f32 %v2271, 0.6931472
    %v2273 = vlog2.pop %v2232
    %v2274 = vmul.f32 %v2273, 0.6931472
    %v2275 = vlog2.pop %v2233
    %v2276 = vmul.f32 %v2275, 0.6931472
    %v2277 = vlog2.pop %v2234
    %v2278 = vmul.f32 %v2277, 0.6931472
    %v2279 = vlog2.pop %v2235
    %v2280 = vmul.f32 %v2279, 0.6931472
    %v2281 = vlog2.pop %v2236
    %v2282 = vmul.f32 %v2281, 0.6931472
    %v2283 = vlog2.pop %v2237
    %v2284 = vmul.f32 %v2283, 0.6931472
    %v2285 = vlog2.pop %v2238
    %v2286 = vmul.f32 %v2285, 0.6931472
    %v2287 = vsub.f32 %v2251, %v2264
    %v2288 = vsub.f32 %v2252, %v2266
    %v2289 = vsub.f32 %v2253, %v2268
    %v2290 = vsub.f32 %v2254, %v2270
    %v2291 = vsub.f32 %v2255, %v2272
    %v2292 = vsub.f32 %v2256, %v2274
    %v2293 = vsub.f32 %v2257, %v2276
    %v2294 = vsub.f32 %v2258, %v2278
    %v2295 = vsub.f32 %v2259, %v2280
    %v2296 = vsub.f32 %v2260, %v2282
    %v2297 = vsub.f32 %v2261, %v2284
    %v2298 = vsub.f32 %v2262, %v2286
    %v2299 = vmul.f32 %v139, %v139
    %v2300 = vmul.f32 %v140, %v140
    %v2301 = vmul.f32 %v141, %v141
    %v2302 = vmul.f32 %v142, %v142
    %v2303 = vmul.f32 %v143, %v143
    %v2304 = vmul.f32 %v144, %v144
    %v2305 = vmul.f32 %v145, %v145
    %v2306 = vmul.f32 %v146, %v146
    %v2307 = vmul.f32 %v147, %v147
    %v2308 = vmul.f32 %v148, %v148
    %v2309 = vmul.f32 %v149, %v149
    %v2310 = vmul.f32 %v150, %v150
    %v2311 = vmul.f32 %v2299, 0.1
    %v2312 = vmul.f32 %v2300, 0.1
    %v2313 = vmul.f32 %v2301, 0.1
    %v2314 = vmul.f32 %v2302, 0.1
    %v2315 = vmul.f32 %v2303, 0.1
    %v2316 = vmul.f32 %v2304, 0.1
    %v2317 = vmul.f32 %v2305, 0.1
    %v2318 = vmul.f32 %v2306, 0.1
    %v2319 = vmul.f32 %v2307, 0.1
    %v2320 = vmul.f32 %v2308, 0.1
    %v2321 = vmul.f32 %v2309, 0.1
    %v2322 = vmul.f32 %v2310, 0.1
    %v2323 = vadd.f32 %v2287, %v2311
    %v2324 = vadd.f32 %v2288, %v2312
    %v2325 = vadd.f32 %v2289, %v2313
    %v2326 = vadd.f32 %v2290, %v2314
    %v2327 = vadd.f32 %v2291, %v2315
    %v2328 = vadd.f32 %v2292, %v2316
    %v2329 = vadd.f32 %v2293, %v2317
    %v2330 = vadd.f32 %v2294, %v2318
    %v2331 = vadd.f32 %v2295, %v2319
    %v2332 = vadd.f32 %v2296, %v2320
    %v2333 = vadd.f32 %v2297, %v2321
    %v2334 = vadd.f32 %v2298, %v2322
    %s2335 = smul.u32 0, 256
    %s2336 = sadd.s32 %s2335, 256
    %p2337 = scmp.gt.s32.totalorder %s2336, 200
    // Predicated region
    $region38: #{tpu_custom_call.1} parent=1 // pred_check
      %p2338 = pneg %p2337
    $region39: #{tpu_custom_call.1} parent=1 // pred_check_branch
      %2340 = sbr.rel (%p2338) target = $region41
    $region40: #{tpu_custom_call.1} parent=1 // pred_region
      %v2341 = vlaneseq
      %v2342 = vand.u32 %v2341, 127
      %v2343 = vadd.s32 %v2342, 128
      %v2344 = vstv %s2335
      %v2345 = vadd.s32 %v2344, %v2342
      %v2346 = vadd.s32 %v2344, %v2343
      %vm2347 = vcmp.lt.s32.totalorder %v2345, 200
      %vm2348 = vcmp.lt.s32.totalorder %v2346, 200
      %v2349 = vsel %vm2347, %v2323, 0.0
      %v2350 = vsel %vm2348, %v2324, 0.0
      %v2351 = vsel %vm2347, %v2325, 0.0
      %v2352 = vsel %vm2348, %v2326, 0.0
      %v2353 = vsel %vm2347, %v2327, 0.0
      %v2354 = vsel %vm2348, %v2328, 0.0
      %v2355 = vsel %vm2347, %v2329, 0.0
      %v2356 = vsel %vm2348, %v2330, 0.0
      %v2357 = vsel %vm2347, %v2331, 0.0
      %v2358 = vsel %vm2348, %v2332, 0.0
      %v2359 = vsel %vm2347, %v2333, 0.0
      %v2360 = vsel %vm2348, %v2334, 0.0
      %v2361 = vadd.f32 %v2349, %v2351
      %v2362 = vadd.f32 %v2350, %v2352
      %v2363 = vadd.f32 %v2361, %v2353
      %v2364 = vadd.f32 %v2362, %v2354
      %v2365 = vadd.f32 %v2363, %v2355
      %v2366 = vadd.f32 %v2364, %v2356
      %v2367 = vadd.f32 %v2365, %v2357
      %v2368 = vadd.f32 %v2366, %v2358
      %v2369 = vadd.f32 %v2367, %v2359
      %v2370 = vadd.f32 %v2368, %v2360
      %v2371 = vld [vmem:[#allocation10] sm:$0xff]
      %v2372 = vld [vmem:[#allocation10 + $0x8] sm:$0xff]
      %v2373 = vadd.f32 %v2371, %v2369
      %v2374 = vadd.f32 %v2372, %v2370
      %2375 = vst [vmem:[#allocation10] sm:$0xff] %v2373
      %2376 = vst [vmem:[#allocation10 + $0x8] sm:$0xff] %v2374
    $region41: #{tpu_custom_call.1} parent=1 // pred_fallthru
      _
    %p2377 = scmp.le.s32.totalorder %s2336, 200
    // Predicated region
    $region42: #{tpu_custom_call.1} parent=1 // pred_check
      %p2378 = pneg %p2377
    $region43: #{tpu_custom_call.1} parent=1 // pred_check_branch
      %2380 = sbr.rel (%p2378) target = $region45
    $region44: #{tpu_custom_call.1} parent=1 // pred_region
      %v2381 = vadd.f32 %v2323, %v2325
      %v2382 = vadd.f32 %v2324, %v2326
      %v2383 = vadd.f32 %v2381, %v2327
      %v2384 = vadd.f32 %v2382, %v2328
      %v2385 = vadd.f32 %v2383, %v2329
      %v2386 = vadd.f32 %v2384, %v2330
      %v2387 = vadd.f32 %v2385, %v2331
      %v2388 = vadd.f32 %v2386, %v2332
      %v2389 = vadd.f32 %v2387, %v2333
      %v2390 = vadd.f32 %v2388, %v2334
      %v2391 = vld [vmem:[#allocation10] sm:$0xff]
      %v2392 = vld [vmem:[#allocation10 + $0x8] sm:$0xff]
      %v2393 = vadd.f32 %v2391, %v2389
      %v2394 = vadd.f32 %v2392, %v2390
      %2395 = vst [vmem:[#allocation10] sm:$0xff] %v2393
      %2396 = vst [vmem:[#allocation10 + $0x8] sm:$0xff] %v2394
    $region45: #{tpu_custom_call.1} parent=1 // pred_fallthru
      _
    // Predicated region
    $region46: #{tpu_custom_call.1} parent=1 // pred_check
      _
    $region47: #{tpu_custom_call.1} parent=1 // pred_check_branch
      %2398 = sbr.rel (0) target = $region49
    $region48: #{tpu_custom_call.1} parent=1 // pred_region
      %2400 = vsyncadd [#allocation4], 0
      %s2402 = sshll.u32 [#allocation10], 4
      %s2403 = int_to_ptr.vmem [resolvable:$true] %s2402
      %s2404 = sshll.u32 %s4, 4
      %s2405 = int_to_ptr.hbm [resolvable:$true] %s2404
      %2407 = dma.vmem_to_hbm [thread:$0]  %s2403, 256, %s2405, [#allocation4]
    $region49: #{tpu_custom_call.1} parent=1 // pred_fallthru
      _
    // Predicated region
    $region50: #{tpu_custom_call.1} parent=1 // pred_check
      _
    $region51: #{tpu_custom_call.1} parent=1 // pred_check_branch
      %2409 = sbr.rel (0) target = $region53
    $region52: #{tpu_custom_call.1} parent=1 // pred_region
      %2411 = dma.done [#allocation4], 256
    $region53: #{tpu_custom_call.1} parent=1 // pred_fallthru
      _
    %2412 = vsyncpa [#allocation3], 1
    %2413 = vsyncpa [#allocation6], 1
    %2414 = vsyncpa [#allocation9], 1
    %2415 = vsyncpa [#allocation4], 1

</llo_original>
